<compile_context>
chip_gen: v6e
topology: v6e:2x2x1
jax: 0.10.0
libtpu: 0.0.40
codegen_flags: <defaults>
</compile_context>

<pallas_src>
import jax
import jax.numpy as jnp
from jax import lax
from jax.experimental import pallas as pl
from jax.experimental.pallas import tpu as pltpu

# bf16 matmul inputs, f32 accumulation + f32 elementwise everywhere.
MATMUL_DTYPE = jnp.bfloat16


# ----------------------------------------------------------------------------
# Generic batched dense kernel:  (N, K) @ (K, M) + (1, M) -> (N, M)
# Used for the hoisted layer-0 input projection and for the deferred head.
# ----------------------------------------------------------------------------
def _dense_kernel(x_ref, w_ref, b_ref, o_ref):
    x = x_ref[...].astype(w_ref.dtype)
    o_ref[...] = (
        jnp.dot(x, w_ref[...], preferred_element_type=jnp.float32) + b_ref[...]
    )


def _row_tile(n, cap=512):
    if n <= cap:
        return n
    rt = cap
    while rt >= 8:
        if n % rt == 0:
            return rt
        rt -= 8
    return n


def _dense(x, w, b):
    N, K = x.shape
    _, M = w.shape
    rt = _row_tile(N)
    # NOTE: for realistic vocab sizes, also tile over M (w_lin columns) to stay
    # inside v7x's 64 MiB VMEM; at these demo sizes the full weight fits.
    return pl.pallas_call(
        _dense_kernel,
        out_shape=jax.ShapeDtypeStruct((N, M), jnp.float32),
        grid_spec=pltpu.PrefetchScalarGridSpec(
            num_scalar_prefetch=0,
            grid=(N // rt,),
            in_specs=[
                pl.BlockSpec((rt, K), lambda i: (i, 0)),
                pl.BlockSpec((K, M), lambda i: (0, 0)),
                pl.BlockSpec((1, M), lambda i: (0, 0)),
            ],
            out_specs=pl.BlockSpec((rt, M), lambda i: (i, 0)),
        ),
        compiler_params=pltpu.CompilerParams(
            dimension_semantics=("parallel",)),  # megacore-shardable on v7x
    )(x, w, b)


# ----------------------------------------------------------------------------
# Sequential LSTM recurrence kernel (grid over TT-timestep chunks).
# ----------------------------------------------------------------------------
def _make_recurrent_kernel(num_layers, hidden, tt, seq_len, batch):
    L, H, B, T = num_layers, hidden, batch, seq_len

    def kernel(*refs):
        g0_ref, h0_ref, c0_ref, w_hh0_ref = refs[0], refs[1], refs[2], refs[3]
        layer_refs = refs[4:4 + 2 * (L - 1)]
        htop_ref, h_state_ref, c_state_ref = refs[-3], refs[-2], refs[-1]

        chunk = pl.program_id(0)
        cdt = w_hh0_ref.dtype  # matmul compute dtype (bf16)

        # h/c outputs map to the same block every grid step -> they persist in
        # VMEM across chunks and carry the recurrent state.
        @pl.when(chunk == 0)
        def _():
            h_state_ref[...] = h0_ref[...]
            c_state_ref[...] = c0_ref[...]

        # Hoist weight loads out of the unrolled time loop.
        w_hh0 = w_hh0_ref[...]                                       # (H, 4H)
        w_fused = [layer_refs[2 * l][...] for l in range(L - 1)]     # (2H, 4H)
        biases = [layer_refs[2 * l + 1][...] for l in range(L - 1)]  # (1, 4H)

        def lstm_cell(gates, c_prev):
            # PyTorch gate order: i, f, g, o  (f32 elementwise math)
            i_g = jax.nn.sigmoid(gates[:, 0 * H:1 * H])
            f_g = jax.nn.sigmoid(gates[:, 1 * H:2 * H])
            g_g = jnp.tanh(gates[:, 2 * H:3 * H])
            o_g = jax.nn.sigmoid(gates[:, 3 * H:4 * H])
            c_new = f_g * c_prev + i_g * g_g
            h_new = o_g * jnp.tanh(c_new)
            return h_new, c_new

        def step(s, carry):
            hs = list(carry[:L])
            cs = list(carry[L:])
            t = chunk * tt + s  # global timestep

            # Layer 0: input projection precomputed -> single h @ W_hh matmul.
            gates = g0_ref[s] + jnp.dot(
                hs[0].astype(cdt), w_hh0, preferred_element_type=jnp.float32)
            h_new, c_new = lstm_cell(gates, cs[0])
            hs[0], cs[0] = h_new, c_new
            x = h_new

            # Layers >= 1: fused [x_t, h_prev] @ W_fused -> one MXU push/layer.
            for l in range(1, L):
                xcat = jnp.concatenate([x, hs[l]], axis=-1).astype(cdt)
                gates = jnp.dot(
                    xcat, w_fused[l - 1],
                    preferred_element_type=jnp.float32) + biases[l - 1]
                h_new, c_new = lstm_cell(gates, cs[l])
                hs[l], cs[l] = h_new, c_new
                x = h_new

            # Scatter top-layer hidden state directly into (B*T, H) row order
            # row = b*T + t, so the deferred head needs no transpose.
            for b in range(B):
                htop_ref[pl.ds(b * T + t, 1), :] = x[b:b + 1, :]
            return tuple(hs) + tuple(cs)

        carry0 = tuple(h_state_ref[l] for l in range(L)) + tuple(
            c_state_ref[l] for l in range(L))
        carry = lax.fori_loop(0, tt, step, carry0, unroll=True)

        for l in range(L):
            h_state_ref[l] = carry[l]
            c_state_ref[l] = carry[L + l]

    return kernel


# ----------------------------------------------------------------------------
# Forward pass wrapper (matches TextGenerator.forward semantics).
# ----------------------------------------------------------------------------
def text_generator_forward(params, tokens, h0, c0, *, tt=None):
    embed = params["embed"]            # (V, E)
    V, E = embed.shape
    L, B, H = h0.shape
    T = tokens.shape[1]
    tt = T if tt is None else tt       # timesteps per grid step
    assert T % tt == 0
    cdt = MATMUL_DTYPE

    # Embedding gather directly in time-major order (glue; gather stays in JAX).
    x_tm = jnp.take(embed, tokens.T, axis=0)                 # (T, B, E) f32

    # Hoisted layer-0 input projection for all timesteps (batched, parallel).
    g0 = _dense(x_tm.reshape(T * B, E),
                params["w_ih_0"].astype(cdt), params["b_0"])
    g0 = g0.reshape(T, B, 4 * H)                             # (T, B, 4H) f32

    # Sequential recurrence.
    weight_args = [params["w_hh_0"].astype(cdt)]
    in_specs = [
        pl.BlockSpec((tt, B, 4 * H), lambda c: (c, 0, 0)),   # g0 chunk
        pl.BlockSpec((L, B, H), lambda c: (0, 0, 0)),        # h0
        pl.BlockSpec((L, B, H), lambda c: (0, 0, 0)),        # c0
        pl.BlockSpec((H, 4 * H), lambda c: (0, 0)),          # w_hh_0
    ]
    for layer in range(1, L):
        weight_args += [params[f"w_fused_{layer}"].astype(cdt),
                        params[f"b_{layer}"]]
        in_specs += [
            pl.BlockSpec((2 * H, 4 * H), lambda c: (0, 0)),
            pl.BlockSpec((1, 4 * H), lambda c: (0, 0)),
        ]

    out_shapes = (
        jax.ShapeDtypeStruct((B * T, H), jnp.float32),       # top hidden states
        jax.ShapeDtypeStruct((L, B, H), jnp.float32),        # h_n
        jax.ShapeDtypeStruct((L, B, H), jnp.float32),        # c_n
    )
    out_specs = (
        pl.BlockSpec((B * T, H), lambda c: (0, 0)),          # VMEM-resident
        pl.BlockSpec((L, B, H), lambda c: (0, 0, 0)),        # carried state
        pl.BlockSpec((L, B, H), lambda c: (0, 0, 0)),        # carried state
    )

    kernel = _make_recurrent_kernel(L, H, tt, T, B)
    h_top, h_n, c_n = pl.pallas_call(
        kernel,
        out_shape=out_shapes,
        grid_spec=pltpu.PrefetchScalarGridSpec(
            num_scalar_prefetch=0,
            grid=(T // tt,),
            in_specs=in_specs,
            out_specs=out_specs,
        ),
        compiler_params=pltpu.CompilerParams(
            dimension_semantics=("arbitrary",)),   # inherently serial in time
    )(g0, h0, c0, *weight_args)

    # Deferred Linear head: rows are already in b*T + t order -> no transpose.
    out = _dense(h_top, params["w_lin"].astype(cdt), params["b_lin"])
    return out, (h_n, c_n)


# ----------------------------------------------------------------------------
# Deterministic PyTorch-style parameters (stored f32; wrapper casts matmul
# weights to bf16). Fused layouts: w_fused_l = [W_ih_l ; W_hh_l] (2H, 4H).
# ----------------------------------------------------------------------------
def init_params(key, vocab_size, embed_size, hidden_size, num_layers):
    keys = jax.random.split(key, 3 + 4 * num_layers)
    params = {"embed": jax.random.normal(
        keys[0], (vocab_size, embed_size), jnp.float32)}
    k = 1.0 / float(hidden_size) ** 0.5
    idx = 1
    for layer in range(num_layers):
        in_dim = embed_size if layer == 0 else hidden_size
        w_ih = jax.random.uniform(
            keys[idx], (4 * hidden_size, in_dim), jnp.float32, -k, k); idx += 1
        w_hh = jax.random.uniform(
            keys[idx], (4 * hidden_size, hidden_size), jnp.float32, -k, k); idx += 1
        b_ih = jax.random.uniform(
            keys[idx], (4 * hidden_size,), jnp.float32, -k, k); idx += 1
        b_hh = jax.random.uniform(
            keys[idx], (4 * hidden_size,), jnp.float32, -k, k); idx += 1
        bias = (b_ih + b_hh).reshape(1, 4 * hidden_size)
        if layer == 0:
            params["w_ih_0"] = w_ih.T                          # (E, 4H)
            params["w_hh_0"] = w_hh.T                          # (H, 4H)
            params["b_0"] = bias
        else:
            params[f"w_fused_{layer}"] = jnp.concatenate(
                [w_ih.T, w_hh.T], axis=0)                      # (2H, 4H)
            params[f"b_{layer}"] = bias
    w_lin = jax.random.uniform(
        keys[idx], (vocab_size, hidden_size), jnp.float32, -k, k); idx += 1
    b_lin = jax.random.uniform(keys[idx], (vocab_size,), jnp.float32, -k, k)
    params["w_lin"] = w_lin.T                                  # (H, V)
    params["b_lin"] = b_lin.reshape(1, vocab_size)
    return params


# ----------------------------------------------------------------------------
# Pure-JAX f32 reference mirroring torch.nn.LSTM(batch_first=True) semantics.
# ----------------------------------------------------------------------------
def reference_forward(params, tokens, h0, c0):
    L, B, H = h0.shape
    T = tokens.shape[1]
    layer_in = jnp.take(params["embed"], tokens, axis=0)       # (B, T, E)
    h_list, c_list = [], []
    for layer in range(L):
        if layer == 0:
            w_ih, w_hh, bias = params["w_ih_0"], params["w_hh_0"], params["b_0"]
        else:
            fused = params[f"w_fused_{layer}"]
            w_ih, w_hh = fused[:H], fused[H:]
            bias = params[f"b_{layer}"]
        h_t, c_t = h0[layer], c0[layer]
        outs = []
        for t in range(T):
            gates = layer_in[:, t, :] @ w_ih + h_t @ w_hh + bias
            i = jax.nn.sigmoid(gates[:, 0 * H:1 * H])
            f = jax.nn.sigmoid(gates[:, 1 * H:2 * H])
            g = jnp.tanh(gates[:, 2 * H:3 * H])
            o = jax.nn.sigmoid(gates[:, 3 * H:4 * H])
            c_t = f * c_t + i * g
            h_t = o * jnp.tanh(c_t)
            outs.append(h_t)
        layer_in = jnp.stack(outs, axis=1)                      # (B, T, H)
        h_list.append(h_t)
        c_list.append(c_t)
    out = layer_in.reshape(B * T, H) @ params["w_lin"] + params["b_lin"]
    return out, (jnp.stack(h_list), jnp.stack(c_list))


if __name__ == "__main__":
    vocab_size, embed_size, hidden_size, num_layers = 64, 32, 32, 2
    B, T = 2, 8

    key = jax.random.PRNGKey(0)
    kp, kx, kh, kc = jax.random.split(key, 4)
    params = init_params(kp, vocab_size, embed_size, hidden_size, num_layers)
    tokens = jax.random.randint(kx, (B, T), 0, vocab_size, dtype=jnp.int32)
    h0 = jax.random.normal(kh, (num_layers, B, hidden_size), jnp.float32)
    c0 = jax.random.normal(kc, (num_layers, B, hidden_size), jnp.float32)

    fwd = jax.jit(text_generator_forward)
    out, (h_n, c_n) = fwd(params, tokens, h0, c0)
    jax.block_until_ready((out, h_n, c_n))

    ref_out, (ref_h, ref_c) = reference_forward(params, tokens, h0, c0)
    assert out.shape == (B * T, vocab_size)
    assert h_n.shape == (num_layers, B, hidden_size)
    assert c_n.shape == (num_layers, B, hidden_size)
    # bf16 matmul inputs / f32 accumulation -> slightly looser tolerance.
    assert jnp.allclose(out, ref_out, atol=5e-2, rtol=5e-2)
    assert jnp.allclose(h_n, ref_h, atol=5e-2, rtol=5e-2)
    assert jnp.allclose(c_n, ref_c, atol=5e-2, rtol=5e-2)

    print("KERNEL_OK")
</pallas_src>

<mosaic_0001>
module attributes {stable_mosaic.version = 11 : i64} {
  func.func @_dense_kernel(%arg0: i32, %arg1: memref<16x32xf32, #tpu.memory_space<vmem>>, %arg2: memref<32x128xbf16, #tpu.memory_space<vmem>>, %arg3: memref<1x128xf32, #tpu.memory_space<vmem>>, %arg4: memref<16x128xf32, #tpu.memory_space<vmem>>) attributes {dimension_semantics = [#tpu.dimension_semantics<parallel>], iteration_bounds = array<i64: 1>, scalar_prefetch = 0 : i64, scratch_operands = 0 : i64, tpu.core_type = #tpu.core_type<tc>, window_params = [{transform_indices = @transform_0, window_bounds = array<i64: 16, 32>}, {pipeline_mode = #tpu.pipeline_mode<synchronous>, transform_indices = @transform_1, window_bounds = array<i64: 32, 128>}, {pipeline_mode = #tpu.pipeline_mode<synchronous>, transform_indices = @transform_2, window_bounds = array<i64: 1, 128>}, {transform_indices = @transform_3, window_bounds = array<i64: 16, 128>}]} {
    %c0 = arith.constant 0 : index
    %c0_0 = arith.constant 0 : index
    %0 = vector.load %arg1[%c0, %c0_0] : memref<16x32xf32, #tpu.memory_space<vmem>>, vector<16x32xf32>
    %1 = arith.truncf %0 : vector<16x32xf32> to vector<16x32xbf16>
    %c0_1 = arith.constant 0 : index
    %c0_2 = arith.constant 0 : index
    %2 = vector.load %arg2[%c0_1, %c0_2] : memref<32x128xbf16, #tpu.memory_space<vmem>>, vector<32x128xbf16>
    %cst = arith.constant dense<0.000000e+00> : vector<16x128xf32>
    %3 = tpu.matmul %1, %2, %cst {dimension_numbers = #tpu.dot_dimension_numbers<[1], [0], [0], [1], [0, 0, 1, 1], [], []>} : vector<16x32xbf16>, vector<32x128xbf16>, vector<16x128xf32> -> vector<16x128xf32>
    %c0_3 = arith.constant 0 : index
    %c0_4 = arith.constant 0 : index
    %4 = vector.load %arg3[%c0_3, %c0_4] : memref<1x128xf32, #tpu.memory_space<vmem>>, vector<1x128xf32>
    %5 = vector.broadcast %4 : vector<1x128xf32> to vector<16x128xf32>
    %6 = arith.addf %3, %5 : vector<16x128xf32>
    %c0_5 = arith.constant 0 : index
    %c0_6 = arith.constant 0 : index
    %7 = vector.load %arg4[%c0_5, %c0_6] : memref<16x128xf32, #tpu.memory_space<vmem>>, vector<16x128xf32>
    tpu.vector_store %arg4[%c0_5, %c0_6], %6 {strides = array<i32>} : memref<16x128xf32, #tpu.memory_space<vmem>>, vector<16x128xf32>,
    return
  }
  func.func @transform_0(%arg0: i32) -> (i32, i32) {
    %c0_i32 = arith.constant 0 : i32
    %c0_i32_0 = arith.constant 0 : i32
    return %arg0, %c0_i32 : i32, i32
  }
  func.func @transform_1(%arg0: i32) -> (i32, i32) {
    %c0_i32 = arith.constant 0 : i32
    %c0_i32_0 = arith.constant 0 : i32
    %c0_i32_1 = arith.constant 0 : i32
    return %c0_i32, %c0_i32_0 : i32, i32
  }
  func.func @transform_2(%arg0: i32) -> (i32, i32) {
    %c0_i32 = arith.constant 0 : i32
    %c0_i32_0 = arith.constant 0 : i32
    %c0_i32_1 = arith.constant 0 : i32
    return %c0_i32, %c0_i32_0 : i32, i32
  }
  func.func @transform_3(%arg0: i32) -> (i32, i32) {
    %c0_i32 = arith.constant 0 : i32
    %c0_i32_0 = arith.constant 0 : i32
    return %arg0, %c0_i32 : i32, i32
  }
}

module attributes {stable_mosaic.version = 11 : i64} {
  func.func @_dense_kernel(%arg0: i32, %arg1: memref<16x32xf32, #tpu.memory_space<vmem>>, %arg2: memref<32x64xbf16, #tpu.memory_space<vmem>>, %arg3: memref<1x64xf32, #tpu.memory_space<vmem>>, %arg4: memref<16x64xf32, #tpu.memory_space<vmem>>) attributes {dimension_semantics = [#tpu.dimension_semantics<parallel>], iteration_bounds = array<i64: 1>, scalar_prefetch = 0 : i64, scratch_operands = 0 : i64, tpu.core_type = #tpu.core_type<tc>, window_params = [{transform_indices = @transform_0, window_bounds = array<i64: 16, 32>}, {pipeline_mode = #tpu.pipeline_mode<synchronous>, transform_indices = @transform_1, window_bounds = array<i64: 32, 64>}, {pipeline_mode = #tpu.pipeline_mode<synchronous>, transform_indices = @transform_2, window_bounds = array<i64: 1, 64>}, {transform_indices = @transform_3, window_bounds = array<i64: 16, 64>}]} {
    %c0 = arith.constant 0 : index
    %c0_0 = arith.constant 0 : index
    %0 = vector.load %arg1[%c0, %c0_0] : memref<16x32xf32, #tpu.memory_space<vmem>>, vector<16x32xf32>
    %1 = arith.truncf %0 : vector<16x32xf32> to vector<16x32xbf16>
    %c0_1 = arith.constant 0 : index
    %c0_2 = arith.constant 0 : index
    %2 = vector.load %arg2[%c0_1, %c0_2] : memref<32x64xbf16, #tpu.memory_space<vmem>>, vector<32x64xbf16>
    %cst = arith.constant dense<0.000000e+00> : vector<16x64xf32>
    %3 = tpu.matmul %1, %2, %cst {dimension_numbers = #tpu.dot_dimension_numbers<[1], [0], [0], [1], [0, 0, 1, 1], [], []>} : vector<16x32xbf16>, vector<32x64xbf16>, vector<16x64xf32> -> vector<16x64xf32>
    %c0_3 = arith.constant 0 : index
    %c0_4 = arith.constant 0 : index
    %4 = vector.load %arg3[%c0_3, %c0_4] : memref<1x64xf32, #tpu.memory_space<vmem>>, vector<1x64xf32>
    %5 = vector.broadcast %4 : vector<1x64xf32> to vector<16x64xf32>
    %6 = arith.addf %3, %5 : vector<16x64xf32>
    %c0_5 = arith.constant 0 : index
    %c0_6 = arith.constant 0 : index
    %7 = vector.load %arg4[%c0_5, %c0_6] : memref<16x64xf32, #tpu.memory_space<vmem>>, vector<16x64xf32>
    tpu.vector_store %arg4[%c0_5, %c0_6], %6 {strides = array<i32>} : memref<16x64xf32, #tpu.memory_space<vmem>>, vector<16x64xf32>,
    return
  }
  func.func @transform_0(%arg0: i32) -> (i32, i32) {
    %c0_i32 = arith.constant 0 : i32
    %c0_i32_0 = arith.constant 0 : i32
    return %arg0, %c0_i32 : i32, i32
  }
  func.func @transform_1(%arg0: i32) -> (i32, i32) {
    %c0_i32 = arith.constant 0 : i32
    %c0_i32_0 = arith.constant 0 : i32
    %c0_i32_1 = arith.constant 0 : i32
    return %c0_i32, %c0_i32_0 : i32, i32
  }
  func.func @transform_2(%arg0: i32) -> (i32, i32) {
    %c0_i32 = arith.constant 0 : i32
    %c0_i32_0 = arith.constant 0 : i32
    %c0_i32_1 = arith.constant 0 : i32
    return %c0_i32, %c0_i32_0 : i32, i32
  }
  func.func @transform_3(%arg0: i32) -> (i32, i32) {
    %c0_i32 = arith.constant 0 : i32
    %c0_i32_0 = arith.constant 0 : i32
    return %arg0, %c0_i32 : i32, i32
  }
}

module attributes {stable_mosaic.version = 11 : i64} {
  func.func @kernel(%arg0: i32, %arg1: memref<8x2x128xf32, #tpu.memory_space<vmem>>, %arg2: memref<2x2x32xf32, #tpu.memory_space<vmem>>, %arg3: memref<2x2x32xf32, #tpu.memory_space<vmem>>, %arg4: memref<32x128xbf16, #tpu.memory_space<vmem>>, %arg5: memref<64x128xbf16, #tpu.memory_space<vmem>>, %arg6: memref<1x128xf32, #tpu.memory_space<vmem>>, %arg7: memref<16x32xf32, #tpu.memory_space<vmem>>, %arg8: memref<2x2x32xf32, #tpu.memory_space<vmem>>, %arg9: memref<2x2x32xf32, #tpu.memory_space<vmem>>) attributes {dimension_semantics = [#tpu.dimension_semantics<arbitrary>], iteration_bounds = array<i64: 1>, scalar_prefetch = 0 : i64, scratch_operands = 0 : i64, tpu.core_type = #tpu.core_type<tc>, window_params = [{transform_indices = @transform_0, window_bounds = array<i64: 8, 2, 128>}, {pipeline_mode = #tpu.pipeline_mode<synchronous>, transform_indices = @transform_1, window_bounds = array<i64: 2, 2, 32>}, {pipeline_mode = #tpu.pipeline_mode<synchronous>, transform_indices = @transform_2, window_bounds = array<i64: 2, 2, 32>}, {pipeline_mode = #tpu.pipeline_mode<synchronous>, transform_indices = @transform_3, window_bounds = array<i64: 32, 128>}, {pipeline_mode = #tpu.pipeline_mode<synchronous>, transform_indices = @transform_4, window_bounds = array<i64: 64, 128>}, {pipeline_mode = #tpu.pipeline_mode<synchronous>, transform_indices = @transform_5, window_bounds = array<i64: 1, 128>}, {pipeline_mode = #tpu.pipeline_mode<synchronous>, transform_indices = @transform_6, window_bounds = array<i64: 16, 32>}, {pipeline_mode = #tpu.pipeline_mode<synchronous>, transform_indices = @transform_7, window_bounds = array<i64: 2, 2, 32>}, {pipeline_mode = #tpu.pipeline_mode<synchronous>, transform_indices = @transform_8, window_bounds = array<i64: 2, 2, 32>}]} {
    %c0_i32 = arith.constant 0 : i32
    %0 = arith.cmpi eq, %arg0, %c0_i32 : i32
    %1 = arith.extui %0 : i1 to i32
    %c0_i32_0 = arith.constant 0 : i32
    %2 = arith.cmpi ne, %1, %c0_i32_0 : i32
    scf.if %2 {
      %c0_149 = arith.constant 0 : index
      %c0_150 = arith.constant 0 : index
      %c0_151 = arith.constant 0 : index
      %594 = vector.load %arg2[%c0_149, %c0_150, %c0_151] : memref<2x2x32xf32, #tpu.memory_space<vmem>>, vector<2x2x32xf32>
      %c0_152 = arith.constant 0 : index
      %c0_153 = arith.constant 0 : index
      %c0_154 = arith.constant 0 : index
      %595 = vector.load %arg8[%c0_152, %c0_153, %c0_154] : memref<2x2x32xf32, #tpu.memory_space<vmem>>, vector<2x2x32xf32>
      tpu.vector_store %arg8[%c0_152, %c0_153, %c0_154], %594 {strides = array<i32>} : memref<2x2x32xf32, #tpu.memory_space<vmem>>, vector<2x2x32xf32>,
      %c0_155 = arith.constant 0 : index
      %c0_156 = arith.constant 0 : index
      %c0_157 = arith.constant 0 : index
      %596 = vector.load %arg3[%c0_155, %c0_156, %c0_157] : memref<2x2x32xf32, #tpu.memory_space<vmem>>, vector<2x2x32xf32>
      %c0_158 = arith.constant 0 : index
      %c0_159 = arith.constant 0 : index
      %c0_160 = arith.constant 0 : index
      %597 = vector.load %arg9[%c0_158, %c0_159, %c0_160] : memref<2x2x32xf32, #tpu.memory_space<vmem>>, vector<2x2x32xf32>
      tpu.vector_store %arg9[%c0_158, %c0_159, %c0_160], %596 {strides = array<i32>} : memref<2x2x32xf32, #tpu.memory_space<vmem>>, vector<2x2x32xf32>,
    } else {
    }
    %c0 = arith.constant 0 : index
    %c0_1 = arith.constant 0 : index
    %3 = vector.load %arg4[%c0, %c0_1] : memref<32x128xbf16, #tpu.memory_space<vmem>>, vector<32x128xbf16>
    %c0_2 = arith.constant 0 : index
    %c0_3 = arith.constant 0 : index
    %4 = vector.load %arg5[%c0_2, %c0_3] : memref<64x128xbf16, #tpu.memory_space<vmem>>, vector<64x128xbf16>
    %c0_4 = arith.constant 0 : index
    %c0_5 = arith.constant 0 : index
    %5 = vector.load %arg6[%c0_4, %c0_5] : memref<1x128xf32, #tpu.memory_space<vmem>>, vector<1x128xf32>
    %c0_6 = arith.constant 0 : index
    %c0_7 = arith.constant 0 : index
    %c0_8 = arith.constant 0 : index
    %6 = vector.load %arg8[%c0_6, %c0_7, %c0_8] : memref<2x2x32xf32, #tpu.memory_space<vmem>>, vector<1x2x32xf32>
    %7 = vector.shape_cast %6 : vector<1x2x32xf32> to vector<2x32xf32>
    %c1 = arith.constant 1 : index
    %c0_9 = arith.constant 0 : index
    %c0_10 = arith.constant 0 : index
    %8 = vector.load %arg8[%c1, %c0_9, %c0_10] : memref<2x2x32xf32, #tpu.memory_space<vmem>>, vector<1x2x32xf32>
    %9 = vector.shape_cast %8 : vector<1x2x32xf32> to vector<2x32xf32>
    %c0_11 = arith.constant 0 : index
    %c0_12 = arith.constant 0 : index
    %c0_13 = arith.constant 0 : index
    %10 = vector.load %arg9[%c0_11, %c0_12, %c0_13] : memref<2x2x32xf32, #tpu.memory_space<vmem>>, vector<1x2x32xf32>
    %11 = vector.shape_cast %10 : vector<1x2x32xf32> to vector<2x32xf32>
    %c1_14 = arith.constant 1 : index
    %c0_15 = arith.constant 0 : index
    %c0_16 = arith.constant 0 : index
    %12 = vector.load %arg9[%c1_14, %c0_15, %c0_16] : memref<2x2x32xf32, #tpu.memory_space<vmem>>, vector<1x2x32xf32>
    %13 = vector.shape_cast %12 : vector<1x2x32xf32> to vector<2x32xf32>
    %c0_i32_17 = arith.constant 0 : i32
    %c8_i32 = arith.constant 8 : i32
    %14 = arith.muli %arg0, %c8_i32 : i32
    %15 = arith.addi %14, %c0_i32_17 : i32
    %16 = arith.index_cast %c0_i32_17 : i32 to index
    %c0_18 = arith.constant 0 : index
    %c0_19 = arith.constant 0 : index
    %17 = vector.load %arg1[%16, %c0_18, %c0_19] : memref<8x2x128xf32, #tpu.memory_space<vmem>>, vector<1x2x128xf32>
    %18 = vector.shape_cast %17 : vector<1x2x128xf32> to vector<2x128xf32>
    %19 = arith.truncf %7 : vector<2x32xf32> to vector<2x32xbf16>
    %cst = arith.constant dense<0.000000e+00> : vector<2x128xf32>
    %20 = tpu.matmul %19, %3, %cst {dimension_numbers = #tpu.dot_dimension_numbers<[1], [0], [0], [1], [0, 0, 1, 1], [], []>} : vector<2x32xbf16>, vector<32x128xbf16>, vector<2x128xf32> -> vector<2x128xf32>
    %21 = arith.addf %18, %20 : vector<2x128xf32>
    %22 = vector.extract_strided_slice %21 {offsets = [0, 0], sizes = [2, 32], strides = [1, 1]} : vector<2x128xf32> to vector<2x32xf32>
    %23 = arith.negf %22 : vector<2x32xf32>
    %24 = math.exp %23 : vector<2x32xf32>
    %cst_20 = arith.constant 1.000000e+00 : f32
    %25 = vector.broadcast %cst_20 : f32 to vector<2x32xf32>
    %26 = arith.addf %25, %24 : vector<2x32xf32>
    %27 = arith.divf %25, %26 : vector<2x32xf32>
    %28 = vector.extract_strided_slice %21 {offsets = [0, 32], sizes = [2, 32], strides = [1, 1]} : vector<2x128xf32> to vector<2x32xf32>
    %29 = arith.negf %28 : vector<2x32xf32>
    %30 = math.exp %29 : vector<2x32xf32>
    %cst_21 = arith.constant 1.000000e+00 : f32
    %31 = vector.broadcast %cst_21 : f32 to vector<2x32xf32>
    %32 = arith.addf %31, %30 : vector<2x32xf32>
    %33 = arith.divf %31, %32 : vector<2x32xf32>
    %34 = vector.extract_strided_slice %21 {offsets = [0, 64], sizes = [2, 32], strides = [1, 1]} : vector<2x128xf32> to vector<2x32xf32>
    %35 = math.tanh %34 : vector<2x32xf32>
    %36 = vector.extract_strided_slice %21 {offsets = [0, 96], sizes = [2, 32], strides = [1, 1]} : vector<2x128xf32> to vector<2x32xf32>
    %37 = arith.negf %36 : vector<2x32xf32>
    %38 = math.exp %37 : vector<2x32xf32>
    %cst_22 = arith.constant 1.000000e+00 : f32
    %39 = vector.broadcast %cst_22 : f32 to vector<2x32xf32>
    %40 = arith.addf %39, %38 : vector<2x32xf32>
    %41 = arith.divf %39, %40 : vector<2x32xf32>
    %42 = arith.mulf %33, %11 : vector<2x32xf32>
    %43 = arith.mulf %27, %35 : vector<2x32xf32>
    %44 = arith.addf %42, %43 : vector<2x32xf32>
    %45 = math.tanh %44 : vector<2x32xf32>
    %46 = arith.mulf %41, %45 : vector<2x32xf32>
    %47 = tpu.concatenate %46, %9 in 1 : vector<2x32xf32>, vector<2x32xf32> -> vector<2x64xf32>
    %48 = arith.truncf %47 : vector<2x64xf32> to vector<2x64xbf16>
    %cst_23 = arith.constant dense<0.000000e+00> : vector<2x128xf32>
    %49 = tpu.matmul %48, %4, %cst_23 {dimension_numbers = #tpu.dot_dimension_numbers<[1], [0], [0], [1], [0, 0, 1, 1], [], []>} : vector<2x64xbf16>, vector<64x128xbf16>, vector<2x128xf32> -> vector<2x128xf32>
    %50 = vector.broadcast %5 : vector<1x128xf32> to vector<2x128xf32>
    %51 = arith.addf %49, %50 : vector<2x128xf32>
    %52 = vector.extract_strided_slice %51 {offsets = [0, 0], sizes = [2, 32], strides = [1, 1]} : vector<2x128xf32> to vector<2x32xf32>
    %53 = arith.negf %52 : vector<2x32xf32>
    %54 = math.exp %53 : vector<2x32xf32>
    %cst_24 = arith.constant 1.000000e+00 : f32
    %55 = vector.broadcast %cst_24 : f32 to vector<2x32xf32>
    %56 = arith.addf %55, %54 : vector<2x32xf32>
    %57 = arith.divf %55, %56 : vector<2x32xf32>
    %58 = vector.extract_strided_slice %51 {offsets = [0, 32], sizes = [2, 32], strides = [1, 1]} : vector<2x128xf32> to vector<2x32xf32>
    %59 = arith.negf %58 : vector<2x32xf32>
    %60 = math.exp %59 : vector<2x32xf32>
    %cst_25 = arith.constant 1.000000e+00 : f32
    %61 = vector.broadcast %cst_25 : f32 to vector<2x32xf32>
    %62 = arith.addf %61, %60 : vector<2x32xf32>
    %63 = arith.divf %61, %62 : vector<2x32xf32>
    %64 = vector.extract_strided_slice %51 {offsets = [0, 64], sizes = [2, 32], strides = [1, 1]} : vector<2x128xf32> to vector<2x32xf32>
    %65 = math.tanh %64 : vector<2x32xf32>
    %66 = vector.extract_strided_slice %51 {offsets = [0, 96], sizes = [2, 32], strides = [1, 1]} : vector<2x128xf32> to vector<2x32xf32>
    %67 = arith.negf %66 : vector<2x32xf32>
    %68 = math.exp %67 : vector<2x32xf32>
    %cst_26 = arith.constant 1.000000e+00 : f32
    %69 = vector.broadcast %cst_26 : f32 to vector<2x32xf32>
    %70 = arith.addf %69, %68 : vector<2x32xf32>
    %71 = arith.divf %69, %70 : vector<2x32xf32>
    %72 = arith.mulf %63, %13 : vector<2x32xf32>
    %73 = arith.mulf %57, %65 : vector<2x32xf32>
    %74 = arith.addf %72, %73 : vector<2x32xf32>
    %75 = math.tanh %74 : vector<2x32xf32>
    %76 = arith.mulf %71, %75 : vector<2x32xf32>
    %77 = vector.extract_strided_slice %76 {offsets = [0, 0], sizes = [1, 32], strides = [1, 1]} : vector<2x32xf32> to vector<1x32xf32>
    %c0_i32_27 = arith.constant 0 : i32
    %78 = arith.addi %c0_i32_27, %15 : i32
    %79 = arith.index_cast %78 : i32 to index
    %c0_28 = arith.constant 0 : index
    %80 = vector.load %arg7[%79, %c0_28] : memref<16x32xf32, #tpu.memory_space<vmem>>, vector<1x32xf32>
    tpu.vector_store %arg7[%79, %c0_28], %77 {strides = array<i32>} : memref<16x32xf32, #tpu.memory_space<vmem>>, vector<1x32xf32>,
    %81 = vector.extract_strided_slice %76 {offsets = [1, 0], sizes = [1, 32], strides = [1, 1]} : vector<2x32xf32> to vector<1x32xf32>
    %c8_i32_29 = arith.constant 8 : i32
    %82 = arith.addi %c8_i32_29, %15 : i32
    %83 = arith.index_cast %82 : i32 to index
    %c0_30 = arith.constant 0 : index
    %84 = vector.load %arg7[%83, %c0_30] : memref<16x32xf32, #tpu.memory_space<vmem>>, vector<1x32xf32>
    tpu.vector_store %arg7[%83, %c0_30], %81 {strides = array<i32>} : memref<16x32xf32, #tpu.memory_space<vmem>>, vector<1x32xf32>,
    %c1_i32 = arith.constant 1 : i32
    %c8_i32_31 = arith.constant 8 : i32
    %85 = arith.muli %arg0, %c8_i32_31 : i32
    %86 = arith.addi %85, %c1_i32 : i32
    %87 = arith.index_cast %c1_i32 : i32 to index
    %c0_32 = arith.constant 0 : index
    %c0_33 = arith.constant 0 : index
    %88 = vector.load %arg1[%87, %c0_32, %c0_33] : memref<8x2x128xf32, #tpu.memory_space<vmem>>, vector<1x2x128xf32>
    %89 = vector.shape_cast %88 : vector<1x2x128xf32> to vector<2x128xf32>
    %90 = arith.truncf %46 : vector<2x32xf32> to vector<2x32xbf16>
    %cst_34 = arith.constant dense<0.000000e+00> : vector<2x128xf32>
    %91 = tpu.matmul %90, %3, %cst_34 {dimension_numbers = #tpu.dot_dimension_numbers<[1], [0], [0], [1], [0, 0, 1, 1], [], []>} : vector<2x32xbf16>, vector<32x128xbf16>, vector<2x128xf32> -> vector<2x128xf32>
    %92 = arith.addf %89, %91 : vector<2x128xf32>
    %93 = vector.extract_strided_slice %92 {offsets = [0, 0], sizes = [2, 32], strides = [1, 1]} : vector<2x128xf32> to vector<2x32xf32>
    %94 = arith.negf %93 : vector<2x32xf32>
    %95 = math.exp %94 : vector<2x32xf32>
    %cst_35 = arith.constant 1.000000e+00 : f32
    %96 = vector.broadcast %cst_35 : f32 to vector<2x32xf32>
    %97 = arith.addf %96, %95 : vector<2x32xf32>
    %98 = arith.divf %96, %97 : vector<2x32xf32>
    %99 = vector.extract_strided_slice %92 {offsets = [0, 32], sizes = [2, 32], strides = [1, 1]} : vector<2x128xf32> to vector<2x32xf32>
    %100 = arith.negf %99 : vector<2x32xf32>
    %101 = math.exp %100 : vector<2x32xf32>
    %cst_36 = arith.constant 1.000000e+00 : f32
    %102 = vector.broadcast %cst_36 : f32 to vector<2x32xf32>
    %103 = arith.addf %102, %101 : vector<2x32xf32>
    %104 = arith.divf %102, %103 : vector<2x32xf32>
    %105 = vector.extract_strided_slice %92 {offsets = [0, 64], sizes = [2, 32], strides = [1, 1]} : vector<2x128xf32> to vector<2x32xf32>
    %106 = math.tanh %105 : vector<2x32xf32>
    %107 = vector.extract_strided_slice %92 {offsets = [0, 96], sizes = [2, 32], strides = [1, 1]} : vector<2x128xf32> to vector<2x32xf32>
    %108 = arith.negf %107 : vector<2x32xf32>
    %109 = math.exp %108 : vector<2x32xf32>
    %cst_37 = arith.constant 1.000000e+00 : f32
    %110 = vector.broadcast %cst_37 : f32 to vector<2x32xf32>
    %111 = arith.addf %110, %109 : vector<2x32xf32>
    %112 = arith.divf %110, %111 : vector<2x32xf32>
    %113 = arith.mulf %104, %44 : vector<2x32xf32>
    %114 = arith.mulf %98, %106 : vector<2x32xf32>
    %115 = arith.addf %113, %114 : vector<2x32xf32>
    %116 = math.tanh %115 : vector<2x32xf32>
    %117 = arith.mulf %112, %116 : vector<2x32xf32>
    %118 = tpu.concatenate %117, %76 in 1 : vector<2x32xf32>, vector<2x32xf32> -> vector<2x64xf32>
    %119 = arith.truncf %118 : vector<2x64xf32> to vector<2x64xbf16>
    %cst_38 = arith.constant dense<0.000000e+00> : vector<2x128xf32>
    %120 = tpu.matmul %119, %4, %cst_38 {dimension_numbers = #tpu.dot_dimension_numbers<[1], [0], [0], [1], [0, 0, 1, 1], [], []>} : vector<2x64xbf16>, vector<64x128xbf16>, vector<2x128xf32> -> vector<2x128xf32>
    %121 = vector.broadcast %5 : vector<1x128xf32> to vector<2x128xf32>
    %122 = arith.addf %120, %121 : vector<2x128xf32>
    %123 = vector.extract_strided_slice %122 {offsets = [0, 0], sizes = [2, 32], strides = [1, 1]} : vector<2x128xf32> to vector<2x32xf32>
    %124 = arith.negf %123 : vector<2x32xf32>
    %125 = math.exp %124 : vector<2x32xf32>
    %cst_39 = arith.constant 1.000000e+00 : f32
    %126 = vector.broadcast %cst_39 : f32 to vector<2x32xf32>
    %127 = arith.addf %126, %125 : vector<2x32xf32>
    %128 = arith.divf %126, %127 : vector<2x32xf32>
    %129 = vector.extract_strided_slice %122 {offsets = [0, 32], sizes = [2, 32], strides = [1, 1]} : vector<2x128xf32> to vector<2x32xf32>
    %130 = arith.negf %129 : vector<2x32xf32>
    %131 = math.exp %130 : vector<2x32xf32>
    %cst_40 = arith.constant 1.000000e+00 : f32
    %132 = vector.broadcast %cst_40 : f32 to vector<2x32xf32>
    %133 = arith.addf %132, %131 : vector<2x32xf32>
    %134 = arith.divf %132, %133 : vector<2x32xf32>
    %135 = vector.extract_strided_slice %122 {offsets = [0, 64], sizes = [2, 32], strides = [1, 1]} : vector<2x128xf32> to vector<2x32xf32>
    %136 = math.tanh %135 : vector<2x32xf32>
    %137 = vector.extract_strided_slice %122 {offsets = [0, 96], sizes = [2, 32], strides = [1, 1]} : vector<2x128xf32> to vector<2x32xf32>
    %138 = arith.negf %137 : vector<2x32xf32>
    %139 = math.exp %138 : vector<2x32xf32>
    %cst_41 = arith.constant 1.000000e+00 : f32
    %140 = vector.broadcast %cst_41 : f32 to vector<2x32xf32>
    %141 = arith.addf %140, %139 : vector<2x32xf32>
    %142 = arith.divf %140, %141 : vector<2x32xf32>
    %143 = arith.mulf %134, %74 : vector<2x32xf32>
    %144 = arith.mulf %128, %136 : vector<2x32xf32>
    %145 = arith.addf %143, %144 : vector<2x32xf32>
    %146 = math.tanh %145 : vector<2x32xf32>
    %147 = arith.mulf %142, %146 : vector<2x32xf32>
    %148 = vector.extract_strided_slice %147 {offsets = [0, 0], sizes = [1, 32], strides = [1, 1]} : vector<2x32xf32> to vector<1x32xf32>
    %c0_i32_42 = arith.constant 0 : i32
    %149 = arith.addi %c0_i32_42, %86 : i32
    %150 = arith.index_cast %149 : i32 to index
    %c0_43 = arith.constant 0 : index
    %151 = vector.load %arg7[%150, %c0_43] : memref<16x32xf32, #tpu.memory_space<vmem>>, vector<1x32xf32>
    tpu.vector_store %arg7[%150, %c0_43], %148 {strides = array<i32>} : memref<16x32xf32, #tpu.memory_space<vmem>>, vector<1x32xf32>,
    %152 = vector.extract_strided_slice %147 {offsets = [1, 0], sizes = [1, 32], strides = [1, 1]} : vector<2x32xf32> to vector<1x32xf32>
    %c8_i32_44 = arith.constant 8 : i32
    %153 = arith.addi %c8_i32_44, %86 : i32
    %154 = arith.index_cast %153 : i32 to index
    %c0_45 = arith.constant 0 : index
    %155 = vector.load %arg7[%154, %c0_45] : memref<16x32xf32, #tpu.memory_space<vmem>>, vector<1x32xf32>
    tpu.vector_store %arg7[%154, %c0_45], %152 {strides = array<i32>} : memref<16x32xf32, #tpu.memory_space<vmem>>, vector<1x32xf32>,
    %c2_i32 = arith.constant 2 : i32
    %c8_i32_46 = arith.constant 8 : i32
    %156 = arith.muli %arg0, %c8_i32_46 : i32
    %157 = arith.addi %156, %c2_i32 : i32
    %158 = arith.index_cast %c2_i32 : i32 to index
    %c0_47 = arith.constant 0 : index
    %c0_48 = arith.constant 0 : index
    %159 = vector.load %arg1[%158, %c0_47, %c0_48] : memref<8x2x128xf32, #tpu.memory_space<vmem>>, vector<1x2x128xf32>
    %160 = vector.shape_cast %159 : vector<1x2x128xf32> to vector<2x128xf32>
    %161 = arith.truncf %117 : vector<2x32xf32> to vector<2x32xbf16>
    %cst_49 = arith.constant dense<0.000000e+00> : vector<2x128xf32>
    %162 = tpu.matmul %161, %3, %cst_49 {dimension_numbers = #tpu.dot_dimension_numbers<[1], [0], [0], [1], [0, 0, 1, 1], [], []>} : vector<2x32xbf16>, vector<32x128xbf16>, vector<2x128xf32> -> vector<2x128xf32>
    %163 = arith.addf %160, %162 : vector<2x128xf32>
    %164 = vector.extract_strided_slice %163 {offsets = [0, 0], sizes = [2, 32], strides = [1, 1]} : vector<2x128xf32> to vector<2x32xf32>
    %165 = arith.negf %164 : vector<2x32xf32>
    %166 = math.exp %165 : vector<2x32xf32>
    %cst_50 = arith.constant 1.000000e+00 : f32
    %167 = vector.broadcast %cst_50 : f32 to vector<2x32xf32>
    %168 = arith.addf %167, %166 : vector<2x32xf32>
    %169 = arith.divf %167, %168 : vector<2x32xf32>
    %170 = vector.extract_strided_slice %163 {offsets = [0, 32], sizes = [2, 32], strides = [1, 1]} : vector<2x128xf32> to vector<2x32xf32>
    %171 = arith.negf %170 : vector<2x32xf32>
    %172 = math.exp %171 : vector<2x32xf32>
    %cst_51 = arith.constant 1.000000e+00 : f32
    %173 = vector.broadcast %cst_51 : f32 to vector<2x32xf32>
    %174 = arith.addf %173, %172 : vector<2x32xf32>
    %175 = arith.divf %173, %174 : vector<2x32xf32>
    %176 = vector.extract_strided_slice %163 {offsets = [0, 64], sizes = [2, 32], strides = [1, 1]} : vector<2x128xf32> to vector<2x32xf32>
    %177 = math.tanh %176 : vector<2x32xf32>
    %178 = vector.extract_strided_slice %163 {offsets = [0, 96], sizes = [2, 32], strides = [1, 1]} : vector<2x128xf32> to vector<2x32xf32>
    %179 = arith.negf %178 : vector<2x32xf32>
    %180 = math.exp %179 : vector<2x32xf32>
    %cst_52 = arith.constant 1.000000e+00 : f32
    %181 = vector.broadcast %cst_52 : f32 to vector<2x32xf32>
    %182 = arith.addf %181, %180 : vector<2x32xf32>
    %183 = arith.divf %181, %182 : vector<2x32xf32>
    %184 = arith.mulf %175, %115 : vector<2x32xf32>
    %185 = arith.mulf %169, %177 : vector<2x32xf32>
    %186 = arith.addf %184, %185 : vector<2x32xf32>
    %187 = math.tanh %186 : vector<2x32xf32>
    %188 = arith.mulf %183, %187 : vector<2x32xf32>
    %189 = tpu.concatenate %188, %147 in 1 : vector<2x32xf32>, vector<2x32xf32> -> vector<2x64xf32>
    %190 = arith.truncf %189 : vector<2x64xf32> to vector<2x64xbf16>
    %cst_53 = arith.constant dense<0.000000e+00> : vector<2x128xf32>
    %191 = tpu.matmul %190, %4, %cst_53 {dimension_numbers = #tpu.dot_dimension_numbers<[1], [0], [0], [1], [0, 0, 1, 1], [], []>} : vector<2x64xbf16>, vector<64x128xbf16>, vector<2x128xf32> -> vector<2x128xf32>
    %192 = vector.broadcast %5 : vector<1x128xf32> to vector<2x128xf32>
    %193 = arith.addf %191, %192 : vector<2x128xf32>
    %194 = vector.extract_strided_slice %193 {offsets = [0, 0], sizes = [2, 32], strides = [1, 1]} : vector<2x128xf32> to vector<2x32xf32>
    %195 = arith.negf %194 : vector<2x32xf32>
    %196 = math.exp %195 : vector<2x32xf32>
    %cst_54 = arith.constant 1.000000e+00 : f32
    %197 = vector.broadcast %cst_54 : f32 to vector<2x32xf32>
    %198 = arith.addf %197, %196 : vector<2x32xf32>
    %199 = arith.divf %197, %198 : vector<2x32xf32>
    %200 = vector.extract_strided_slice %193 {offsets = [0, 32], sizes = [2, 32], strides = [1, 1]} : vector<2x128xf32> to vector<2x32xf32>
    %201 = arith.negf %200 : vector<2x32xf32>
    %202 = math.exp %201 : vector<2x32xf32>
    %cst_55 = arith.constant 1.000000e+00 : f32
    %203 = vector.broadcast %cst_55 : f32 to vector<2x32xf32>
    %204 = arith.addf %203, %202 : vector<2x32xf32>
    %205 = arith.divf %203, %204 : vector<2x32xf32>
    %206 = vector.extract_strided_slice %193 {offsets = [0, 64], sizes = [2, 32], strides = [1, 1]} : vector<2x128xf32> to vector<2x32xf32>
    %207 = math.tanh %206 : vector<2x32xf32>
    %208 = vector.extract_strided_slice %193 {offsets = [0, 96], sizes = [2, 32], strides = [1, 1]} : vector<2x128xf32> to vector<2x32xf32>
    %209 = arith.negf %208 : vector<2x32xf32>
    %210 = math.exp %209 : vector<2x32xf32>
    %cst_56 = arith.constant 1.000000e+00 : f32
    %211 = vector.broadcast %cst_56 : f32 to vector<2x32xf32>
    %212 = arith.addf %211, %210 : vector<2x32xf32>
    %213 = arith.divf %211, %212 : vector<2x32xf32>
    %214 = arith.mulf %205, %145 : vector<2x32xf32>
    %215 = arith.mulf %199, %207 : vector<2x32xf32>
    %216 = arith.addf %214, %215 : vector<2x32xf32>
    %217 = math.tanh %216 : vector<2x32xf32>
    %218 = arith.mulf %213, %217 : vector<2x32xf32>
    %219 = vector.extract_strided_slice %218 {offsets = [0, 0], sizes = [1, 32], strides = [1, 1]} : vector<2x32xf32> to vector<1x32xf32>
    %c0_i32_57 = arith.constant 0 : i32
    %220 = arith.addi %c0_i32_57, %157 : i32
    %221 = arith.index_cast %220 : i32 to index
    %c0_58 = arith.constant 0 : index
    %222 = vector.load %arg7[%221, %c0_58] : memref<16x32xf32, #tpu.memory_space<vmem>>, vector<1x32xf32>
    tpu.vector_store %arg7[%221, %c0_58], %219 {strides = array<i32>} : memref<16x32xf32, #tpu.memory_space<vmem>>, vector<1x32xf32>,
    %223 = vector.extract_strided_slice %218 {offsets = [1, 0], sizes = [1, 32], strides = [1, 1]} : vector<2x32xf32> to vector<1x32xf32>
    %c8_i32_59 = arith.constant 8 : i32
    %224 = arith.addi %c8_i32_59, %157 : i32
    %225 = arith.index_cast %224 : i32 to index
    %c0_60 = arith.constant 0 : index
    %226 = vector.load %arg7[%225, %c0_60] : memref<16x32xf32, #tpu.memory_space<vmem>>, vector<1x32xf32>
    tpu.vector_store %arg7[%225, %c0_60], %223 {strides = array<i32>} : memref<16x32xf32, #tpu.memory_space<vmem>>, vector<1x32xf32>,
    %c3_i32 = arith.constant 3 : i32
    %c8_i32_61 = arith.constant 8 : i32
    %227 = arith.muli %arg0, %c8_i32_61 : i32
    %228 = arith.addi %227, %c3_i32 : i32
    %229 = arith.index_cast %c3_i32 : i32 to index
    %c0_62 = arith.constant 0 : index
    %c0_63 = arith.constant 0 : index
    %230 = vector.load %arg1[%229, %c0_62, %c0_63] : memref<8x2x128xf32, #tpu.memory_space<vmem>>, vector<1x2x128xf32>
    %231 = vector.shape_cast %230 : vector<1x2x128xf32> to vector<2x128xf32>
    %232 = arith.truncf %188 : vector<2x32xf32> to vector<2x32xbf16>
    %cst_64 = arith.constant dense<0.000000e+00> : vector<2x128xf32>
    %233 = tpu.matmul %232, %3, %cst_64 {dimension_numbers = #tpu.dot_dimension_numbers<[1], [0], [0], [1], [0, 0, 1, 1], [], []>} : vector<2x32xbf16>, vector<32x128xbf16>, vector<2x128xf32> -> vector<2x128xf32>
    %234 = arith.addf %231, %233 : vector<2x128xf32>
    %235 = vector.extract_strided_slice %234 {offsets = [0, 0], sizes = [2, 32], strides = [1, 1]} : vector<2x128xf32> to vector<2x32xf32>
    %236 = arith.negf %235 : vector<2x32xf32>
    %237 = math.exp %236 : vector<2x32xf32>
    %cst_65 = arith.constant 1.000000e+00 : f32
    %238 = vector.broadcast %cst_65 : f32 to vector<2x32xf32>
    %239 = arith.addf %238, %237 : vector<2x32xf32>
    %240 = arith.divf %238, %239 : vector<2x32xf32>
    %241 = vector.extract_strided_slice %234 {offsets = [0, 32], sizes = [2, 32], strides = [1, 1]} : vector<2x128xf32> to vector<2x32xf32>
    %242 = arith.negf %241 : vector<2x32xf32>
    %243 = math.exp %242 : vector<2x32xf32>
    %cst_66 = arith.constant 1.000000e+00 : f32
    %244 = vector.broadcast %cst_66 : f32 to vector<2x32xf32>
    %245 = arith.addf %244, %243 : vector<2x32xf32>
    %246 = arith.divf %244, %245 : vector<2x32xf32>
    %247 = vector.extract_strided_slice %234 {offsets = [0, 64], sizes = [2, 32], strides = [1, 1]} : vector<2x128xf32> to vector<2x32xf32>
    %248 = math.tanh %247 : vector<2x32xf32>
    %249 = vector.extract_strided_slice %234 {offsets = [0, 96], sizes = [2, 32], strides = [1, 1]} : vector<2x128xf32> to vector<2x32xf32>
    %250 = arith.negf %249 : vector<2x32xf32>
    %251 = math.exp %250 : vector<2x32xf32>
    %cst_67 = arith.constant 1.000000e+00 : f32
    %252 = vector.broadcast %cst_67 : f32 to vector<2x32xf32>
    %253 = arith.addf %252, %251 : vector<2x32xf32>
    %254 = arith.divf %252, %253 : vector<2x32xf32>
    %255 = arith.mulf %246, %186 : vector<2x32xf32>
    %256 = arith.mulf %240, %248 : vector<2x32xf32>
    %257 = arith.addf %255, %256 : vector<2x32xf32>
    %258 = math.tanh %257 : vector<2x32xf32>
    %259 = arith.mulf %254, %258 : vector<2x32xf32>
    %260 = tpu.concatenate %259, %218 in 1 : vector<2x32xf32>, vector<2x32xf32> -> vector<2x64xf32>
    %261 = arith.truncf %260 : vector<2x64xf32> to vector<2x64xbf16>
    %cst_68 = arith.constant dense<0.000000e+00> : vector<2x128xf32>
    %262 = tpu.matmul %261, %4, %cst_68 {dimension_numbers = #tpu.dot_dimension_numbers<[1], [0], [0], [1], [0, 0, 1, 1], [], []>} : vector<2x64xbf16>, vector<64x128xbf16>, vector<2x128xf32> -> vector<2x128xf32>
    %263 = vector.broadcast %5 : vector<1x128xf32> to vector<2x128xf32>
    %264 = arith.addf %262, %263 : vector<2x128xf32>
    %265 = vector.extract_strided_slice %264 {offsets = [0, 0], sizes = [2, 32], strides = [1, 1]} : vector<2x128xf32> to vector<2x32xf32>
    %266 = arith.negf %265 : vector<2x32xf32>
    %267 = math.exp %266 : vector<2x32xf32>
    %cst_69 = arith.constant 1.000000e+00 : f32
    %268 = vector.broadcast %cst_69 : f32 to vector<2x32xf32>
    %269 = arith.addf %268, %267 : vector<2x32xf32>
    %270 = arith.divf %268, %269 : vector<2x32xf32>
    %271 = vector.extract_strided_slice %264 {offsets = [0, 32], sizes = [2, 32], strides = [1, 1]} : vector<2x128xf32> to vector<2x32xf32>
    %272 = arith.negf %271 : vector<2x32xf32>
    %273 = math.exp %272 : vector<2x32xf32>
    %cst_70 = arith.constant 1.000000e+00 : f32
    %274 = vector.broadcast %cst_70 : f32 to vector<2x32xf32>
    %275 = arith.addf %274, %273 : vector<2x32xf32>
    %276 = arith.divf %274, %275 : vector<2x32xf32>
    %277 = vector.extract_strided_slice %264 {offsets = [0, 64], sizes = [2, 32], strides = [1, 1]} : vector<2x128xf32> to vector<2x32xf32>
    %278 = math.tanh %277 : vector<2x32xf32>
    %279 = vector.extract_strided_slice %264 {offsets = [0, 96], sizes = [2, 32], strides = [1, 1]} : vector<2x128xf32> to vector<2x32xf32>
    %280 = arith.negf %279 : vector<2x32xf32>
    %281 = math.exp %280 : vector<2x32xf32>
    %cst_71 = arith.constant 1.000000e+00 : f32
    %282 = vector.broadcast %cst_71 : f32 to vector<2x32xf32>
    %283 = arith.addf %282, %281 : vector<2x32xf32>
    %284 = arith.divf %282, %283 : vector<2x32xf32>
    %285 = arith.mulf %276, %216 : vector<2x32xf32>
    %286 = arith.mulf %270, %278 : vector<2x32xf32>
    %287 = arith.addf %285, %286 : vector<2x32xf32>
    %288 = math.tanh %287 : vector<2x32xf32>
    %289 = arith.mulf %284, %288 : vector<2x32xf32>
    %290 = vector.extract_strided_slice %289 {offsets = [0, 0], sizes = [1, 32], strides = [1, 1]} : vector<2x32xf32> to vector<1x32xf32>
    %c0_i32_72 = arith.constant 0 : i32
    %291 = arith.addi %c0_i32_72, %228 : i32
    %292 = arith.index_cast %291 : i32 to index
    %c0_73 = arith.constant 0 : index
    %293 = vector.load %arg7[%292, %c0_73] : memref<16x32xf32, #tpu.memory_space<vmem>>, vector<1x32xf32>
    tpu.vector_store %arg7[%292, %c0_73], %290 {strides = array<i32>} : memref<16x32xf32, #tpu.memory_space<vmem>>, vector<1x32xf32>,
    %294 = vector.extract_strided_slice %289 {offsets = [1, 0], sizes = [1, 32], strides = [1, 1]} : vector<2x32xf32> to vector<1x32xf32>
    %c8_i32_74 = arith.constant 8 : i32
    %295 = arith.addi %c8_i32_74, %228 : i32
    %296 = arith.index_cast %295 : i32 to index
    %c0_75 = arith.constant 0 : index
    %297 = vector.load %arg7[%296, %c0_75] : memref<16x32xf32, #tpu.memory_space<vmem>>, vector<1x32xf32>
    tpu.vector_store %arg7[%296, %c0_75], %294 {strides = array<i32>} : memref<16x32xf32, #tpu.memory_space<vmem>>, vector<1x32xf32>,
    %c4_i32 = arith.constant 4 : i32
    %c8_i32_76 = arith.constant 8 : i32
    %298 = arith.muli %arg0, %c8_i32_76 : i32
    %299 = arith.addi %298, %c4_i32 : i32
    %300 = arith.index_cast %c4_i32 : i32 to index
    %c0_77 = arith.constant 0 : index
    %c0_78 = arith.constant 0 : index
    %301 = vector.load %arg1[%300, %c0_77, %c0_78] : memref<8x2x128xf32, #tpu.memory_space<vmem>>, vector<1x2x128xf32>
    %302 = vector.shape_cast %301 : vector<1x2x128xf32> to vector<2x128xf32>
    %303 = arith.truncf %259 : vector<2x32xf32> to vector<2x32xbf16>
    %cst_79 = arith.constant dense<0.000000e+00> : vector<2x128xf32>
    %304 = tpu.matmul %303, %3, %cst_79 {dimension_numbers = #tpu.dot_dimension_numbers<[1], [0], [0], [1], [0, 0, 1, 1], [], []>} : vector<2x32xbf16>, vector<32x128xbf16>, vector<2x128xf32> -> vector<2x128xf32>
    %305 = arith.addf %302, %304 : vector<2x128xf32>
    %306 = vector.extract_strided_slice %305 {offsets = [0, 0], sizes = [2, 32], strides = [1, 1]} : vector<2x128xf32> to vector<2x32xf32>
    %307 = arith.negf %306 : vector<2x32xf32>
    %308 = math.exp %307 : vector<2x32xf32>
    %cst_80 = arith.constant 1.000000e+00 : f32
    %309 = vector.broadcast %cst_80 : f32 to vector<2x32xf32>
    %310 = arith.addf %309, %308 : vector<2x32xf32>
    %311 = arith.divf %309, %310 : vector<2x32xf32>
    %312 = vector.extract_strided_slice %305 {offsets = [0, 32], sizes = [2, 32], strides = [1, 1]} : vector<2x128xf32> to vector<2x32xf32>
    %313 = arith.negf %312 : vector<2x32xf32>
    %314 = math.exp %313 : vector<2x32xf32>
    %cst_81 = arith.constant 1.000000e+00 : f32
    %315 = vector.broadcast %cst_81 : f32 to vector<2x32xf32>
    %316 = arith.addf %315, %314 : vector<2x32xf32>
    %317 = arith.divf %315, %316 : vector<2x32xf32>
    %318 = vector.extract_strided_slice %305 {offsets = [0, 64], sizes = [2, 32], strides = [1, 1]} : vector<2x128xf32> to vector<2x32xf32>
    %319 = math.tanh %318 : vector<2x32xf32>
    %320 = vector.extract_strided_slice %305 {offsets = [0, 96], sizes = [2, 32], strides = [1, 1]} : vector<2x128xf32> to vector<2x32xf32>
    %321 = arith.negf %320 : vector<2x32xf32>
    %322 = math.exp %321 : vector<2x32xf32>
    %cst_82 = arith.constant 1.000000e+00 : f32
    %323 = vector.broadcast %cst_82 : f32 to vector<2x32xf32>
    %324 = arith.addf %323, %322 : vector<2x32xf32>
    %325 = arith.divf %323, %324 : vector<2x32xf32>
    %326 = arith.mulf %317, %257 : vector<2x32xf32>
    %327 = arith.mulf %311, %319 : vector<2x32xf32>
    %328 = arith.addf %326, %327 : vector<2x32xf32>
    %329 = math.tanh %328 : vector<2x32xf32>
    %330 = arith.mulf %325, %329 : vector<2x32xf32>
    %331 = tpu.concatenate %330, %289 in 1 : vector<2x32xf32>, vector<2x32xf32> -> vector<2x64xf32>
    %332 = arith.truncf %331 : vector<2x64xf32> to vector<2x64xbf16>
    %cst_83 = arith.constant dense<0.000000e+00> : vector<2x128xf32>
    %333 = tpu.matmul %332, %4, %cst_83 {dimension_numbers = #tpu.dot_dimension_numbers<[1], [0], [0], [1], [0, 0, 1, 1], [], []>} : vector<2x64xbf16>, vector<64x128xbf16>, vector<2x128xf32> -> vector<2x128xf32>
    %334 = vector.broadcast %5 : vector<1x128xf32> to vector<2x128xf32>
    %335 = arith.addf %333, %334 : vector<2x128xf32>
    %336 = vector.extract_strided_slice %335 {offsets = [0, 0], sizes = [2, 32], strides = [1, 1]} : vector<2x128xf32> to vector<2x32xf32>
    %337 = arith.negf %336 : vector<2x32xf32>
    %338 = math.exp %337 : vector<2x32xf32>
    %cst_84 = arith.constant 1.000000e+00 : f32
    %339 = vector.broadcast %cst_84 : f32 to vector<2x32xf32>
    %340 = arith.addf %339, %338 : vector<2x32xf32>
    %341 = arith.divf %339, %340 : vector<2x32xf32>
    %342 = vector.extract_strided_slice %335 {offsets = [0, 32], sizes = [2, 32], strides = [1, 1]} : vector<2x128xf32> to vector<2x32xf32>
    %343 = arith.negf %342 : vector<2x32xf32>
    %344 = math.exp %343 : vector<2x32xf32>
    %cst_85 = arith.constant 1.000000e+00 : f32
    %345 = vector.broadcast %cst_85 : f32 to vector<2x32xf32>
    %346 = arith.addf %345, %344 : vector<2x32xf32>
    %347 = arith.divf %345, %346 : vector<2x32xf32>
    %348 = vector.extract_strided_slice %335 {offsets = [0, 64], sizes = [2, 32], strides = [1, 1]} : vector<2x128xf32> to vector<2x32xf32>
    %349 = math.tanh %348 : vector<2x32xf32>
    %350 = vector.extract_strided_slice %335 {offsets = [0, 96], sizes = [2, 32], strides = [1, 1]} : vector<2x128xf32> to vector<2x32xf32>
    %351 = arith.negf %350 : vector<2x32xf32>
    %352 = math.exp %351 : vector<2x32xf32>
    %cst_86 = arith.constant 1.000000e+00 : f32
    %353 = vector.broadcast %cst_86 : f32 to vector<2x32xf32>
    %354 = arith.addf %353, %352 : vector<2x32xf32>
    %355 = arith.divf %353, %354 : vector<2x32xf32>
    %356 = arith.mulf %347, %287 : vector<2x32xf32>
    %357 = arith.mulf %341, %349 : vector<2x32xf32>
    %358 = arith.addf %356, %357 : vector<2x32xf32>
    %359 = math.tanh %358 : vector<2x32xf32>
    %360 = arith.mulf %355, %359 : vector<2x32xf32>
    %361 = vector.extract_strided_slice %360 {offsets = [0, 0], sizes = [1, 32], strides = [1, 1]} : vector<2x32xf32> to vector<1x32xf32>
    %c0_i32_87 = arith.constant 0 : i32
    %362 = arith.addi %c0_i32_87, %299 : i32
    %363 = arith.index_cast %362 : i32 to index
    %c0_88 = arith.constant 0 : index
    %364 = vector.load %arg7[%363, %c0_88] : memref<16x32xf32, #tpu.memory_space<vmem>>, vector<1x32xf32>
    tpu.vector_store %arg7[%363, %c0_88], %361 {strides = array<i32>} : memref<16x32xf32, #tpu.memory_space<vmem>>, vector<1x32xf32>,
    %365 = vector.extract_strided_slice %360 {offsets = [1, 0], sizes = [1, 32], strides = [1, 1]} : vector<2x32xf32> to vector<1x32xf32>
    %c8_i32_89 = arith.constant 8 : i32
    %366 = arith.addi %c8_i32_89, %299 : i32
    %367 = arith.index_cast %366 : i32 to index
    %c0_90 = arith.constant 0 : index
    %368 = vector.load %arg7[%367, %c0_90] : memref<16x32xf32, #tpu.memory_space<vmem>>, vector<1x32xf32>
    tpu.vector_store %arg7[%367, %c0_90], %365 {strides = array<i32>} : memref<16x32xf32, #tpu.memory_space<vmem>>, vector<1x32xf32>,
    %c5_i32 = arith.constant 5 : i32
    %c8_i32_91 = arith.constant 8 : i32
    %369 = arith.muli %arg0, %c8_i32_91 : i32
    %370 = arith.addi %369, %c5_i32 : i32
    %371 = arith.index_cast %c5_i32 : i32 to index
    %c0_92 = arith.constant 0 : index
    %c0_93 = arith.constant 0 : index
    %372 = vector.load %arg1[%371, %c0_92, %c0_93] : memref<8x2x128xf32, #tpu.memory_space<vmem>>, vector<1x2x128xf32>
    %373 = vector.shape_cast %372 : vector<1x2x128xf32> to vector<2x128xf32>
    %374 = arith.truncf %330 : vector<2x32xf32> to vector<2x32xbf16>
    %cst_94 = arith.constant dense<0.000000e+00> : vector<2x128xf32>
    %375 = tpu.matmul %374, %3, %cst_94 {dimension_numbers = #tpu.dot_dimension_numbers<[1], [0], [0], [1], [0, 0, 1, 1], [], []>} : vector<2x32xbf16>, vector<32x128xbf16>, vector<2x128xf32> -> vector<2x128xf32>
    %376 = arith.addf %373, %375 : vector<2x128xf32>
    %377 = vector.extract_strided_slice %376 {offsets = [0, 0], sizes = [2, 32], strides = [1, 1]} : vector<2x128xf32> to vector<2x32xf32>
    %378 = arith.negf %377 : vector<2x32xf32>
    %379 = math.exp %378 : vector<2x32xf32>
    %cst_95 = arith.constant 1.000000e+00 : f32
    %380 = vector.broadcast %cst_95 : f32 to vector<2x32xf32>
    %381 = arith.addf %380, %379 : vector<2x32xf32>
    %382 = arith.divf %380, %381 : vector<2x32xf32>
    %383 = vector.extract_strided_slice %376 {offsets = [0, 32], sizes = [2, 32], strides = [1, 1]} : vector<2x128xf32> to vector<2x32xf32>
    %384 = arith.negf %383 : vector<2x32xf32>
    %385 = math.exp %384 : vector<2x32xf32>
    %cst_96 = arith.constant 1.000000e+00 : f32
    %386 = vector.broadcast %cst_96 : f32 to vector<2x32xf32>
    %387 = arith.addf %386, %385 : vector<2x32xf32>
    %388 = arith.divf %386, %387 : vector<2x32xf32>
    %389 = vector.extract_strided_slice %376 {offsets = [0, 64], sizes = [2, 32], strides = [1, 1]} : vector<2x128xf32> to vector<2x32xf32>
    %390 = math.tanh %389 : vector<2x32xf32>
    %391 = vector.extract_strided_slice %376 {offsets = [0, 96], sizes = [2, 32], strides = [1, 1]} : vector<2x128xf32> to vector<2x32xf32>
    %392 = arith.negf %391 : vector<2x32xf32>
    %393 = math.exp %392 : vector<2x32xf32>
    %cst_97 = arith.constant 1.000000e+00 : f32
    %394 = vector.broadcast %cst_97 : f32 to vector<2x32xf32>
    %395 = arith.addf %394, %393 : vector<2x32xf32>
    %396 = arith.divf %394, %395 : vector<2x32xf32>
    %397 = arith.mulf %388, %328 : vector<2x32xf32>
    %398 = arith.mulf %382, %390 : vector<2x32xf32>
    %399 = arith.addf %397, %398 : vector<2x32xf32>
    %400 = math.tanh %399 : vector<2x32xf32>
    %401 = arith.mulf %396, %400 : vector<2x32xf32>
    %402 = tpu.concatenate %401, %360 in 1 : vector<2x32xf32>, vector<2x32xf32> -> vector<2x64xf32>
    %403 = arith.truncf %402 : vector<2x64xf32> to vector<2x64xbf16>
    %cst_98 = arith.constant dense<0.000000e+00> : vector<2x128xf32>
    %404 = tpu.matmul %403, %4, %cst_98 {dimension_numbers = #tpu.dot_dimension_numbers<[1], [0], [0], [1], [0, 0, 1, 1], [], []>} : vector<2x64xbf16>, vector<64x128xbf16>, vector<2x128xf32> -> vector<2x128xf32>
    %405 = vector.broadcast %5 : vector<1x128xf32> to vector<2x128xf32>
    %406 = arith.addf %404, %405 : vector<2x128xf32>
    %407 = vector.extract_strided_slice %406 {offsets = [0, 0], sizes = [2, 32], strides = [1, 1]} : vector<2x128xf32> to vector<2x32xf32>
    %408 = arith.negf %407 : vector<2x32xf32>
    %409 = math.exp %408 : vector<2x32xf32>
    %cst_99 = arith.constant 1.000000e+00 : f32
    %410 = vector.broadcast %cst_99 : f32 to vector<2x32xf32>
    %411 = arith.addf %410, %409 : vector<2x32xf32>
    %412 = arith.divf %410, %411 : vector<2x32xf32>
    %413 = vector.extract_strided_slice %406 {offsets = [0, 32], sizes = [2, 32], strides = [1, 1]} : vector<2x128xf32> to vector<2x32xf32>
    %414 = arith.negf %413 : vector<2x32xf32>
    %415 = math.exp %414 : vector<2x32xf32>
    %cst_100 = arith.constant 1.000000e+00 : f32
    %416 = vector.broadcast %cst_100 : f32 to vector<2x32xf32>
    %417 = arith.addf %416, %415 : vector<2x32xf32>
    %418 = arith.divf %416, %417 : vector<2x32xf32>
    %419 = vector.extract_strided_slice %406 {offsets = [0, 64], sizes = [2, 32], strides = [1, 1]} : vector<2x128xf32> to vector<2x32xf32>
    %420 = math.tanh %419 : vector<2x32xf32>
    %421 = vector.extract_strided_slice %406 {offsets = [0, 96], sizes = [2, 32], strides = [1, 1]} : vector<2x128xf32> to vector<2x32xf32>
    %422 = arith.negf %421 : vector<2x32xf32>
    %423 = math.exp %422 : vector<2x32xf32>
    %cst_101 = arith.constant 1.000000e+00 : f32
    %424 = vector.broadcast %cst_101 : f32 to vector<2x32xf32>
    %425 = arith.addf %424, %423 : vector<2x32xf32>
    %426 = arith.divf %424, %425 : vector<2x32xf32>
    %427 = arith.mulf %418, %358 : vector<2x32xf32>
    %428 = arith.mulf %412, %420 : vector<2x32xf32>
    %429 = arith.addf %427, %428 : vector<2x32xf32>
    %430 = math.tanh %429 : vector<2x32xf32>
    %431 = arith.mulf %426, %430 : vector<2x32xf32>
    %432 = vector.extract_strided_slice %431 {offsets = [0, 0], sizes = [1, 32], strides = [1, 1]} : vector<2x32xf32> to vector<1x32xf32>
    %c0_i32_102 = arith.constant 0 : i32
    %433 = arith.addi %c0_i32_102, %370 : i32
    %434 = arith.index_cast %433 : i32 to index
    %c0_103 = arith.constant 0 : index
    %435 = vector.load %arg7[%434, %c0_103] : memref<16x32xf32, #tpu.memory_space<vmem>>, vector<1x32xf32>
    tpu.vector_store %arg7[%434, %c0_103], %432 {strides = array<i32>} : memref<16x32xf32, #tpu.memory_space<vmem>>, vector<1x32xf32>,
    %436 = vector.extract_strided_slice %431 {offsets = [1, 0], sizes = [1, 32], strides = [1, 1]} : vector<2x32xf32> to vector<1x32xf32>
    %c8_i32_104 = arith.constant 8 : i32
    %437 = arith.addi %c8_i32_104, %370 : i32
    %438 = arith.index_cast %437 : i32 to index
    %c0_105 = arith.constant 0 : index
    %439 = vector.load %arg7[%438, %c0_105] : memref<16x32xf32, #tpu.memory_space<vmem>>, vector<1x32xf32>
    tpu.vector_store %arg7[%438, %c0_105], %436 {strides = array<i32>} : memref<16x32xf32, #tpu.memory_space<vmem>>, vector<1x32xf32>,
    %c6_i32 = arith.constant 6 : i32
    %c8_i32_106 = arith.constant 8 : i32
    %440 = arith.muli %arg0, %c8_i32_106 : i32
    %441 = arith.addi %440, %c6_i32 : i32
    %442 = arith.index_cast %c6_i32 : i32 to index
    %c0_107 = arith.constant 0 : index
    %c0_108 = arith.constant 0 : index
    %443 = vector.load %arg1[%442, %c0_107, %c0_108] : memref<8x2x128xf32, #tpu.memory_space<vmem>>, vector<1x2x128xf32>
    %444 = vector.shape_cast %443 : vector<1x2x128xf32> to vector<2x128xf32>
    %445 = arith.truncf %401 : vector<2x32xf32> to vector<2x32xbf16>
    %cst_109 = arith.constant dense<0.000000e+00> : vector<2x128xf32>
    %446 = tpu.matmul %445, %3, %cst_109 {dimension_numbers = #tpu.dot_dimension_numbers<[1], [0], [0], [1], [0, 0, 1, 1], [], []>} : vector<2x32xbf16>, vector<32x128xbf16>, vector<2x128xf32> -> vector<2x128xf32>
    %447 = arith.addf %444, %446 : vector<2x128xf32>
    %448 = vector.extract_strided_slice %447 {offsets = [0, 0], sizes = [2, 32], strides = [1, 1]} : vector<2x128xf32> to vector<2x32xf32>
    %449 = arith.negf %448 : vector<2x32xf32>
    %450 = math.exp %449 : vector<2x32xf32>
    %cst_110 = arith.constant 1.000000e+00 : f32
    %451 = vector.broadcast %cst_110 : f32 to vector<2x32xf32>
    %452 = arith.addf %451, %450 : vector<2x32xf32>
    %453 = arith.divf %451, %452 : vector<2x32xf32>
    %454 = vector.extract_strided_slice %447 {offsets = [0, 32], sizes = [2, 32], strides = [1, 1]} : vector<2x128xf32> to vector<2x32xf32>
    %455 = arith.negf %454 : vector<2x32xf32>
    %456 = math.exp %455 : vector<2x32xf32>
    %cst_111 = arith.constant 1.000000e+00 : f32
    %457 = vector.broadcast %cst_111 : f32 to vector<2x32xf32>
    %458 = arith.addf %457, %456 : vector<2x32xf32>
    %459 = arith.divf %457, %458 : vector<2x32xf32>
    %460 = vector.extract_strided_slice %447 {offsets = [0, 64], sizes = [2, 32], strides = [1, 1]} : vector<2x128xf32> to vector<2x32xf32>
    %461 = math.tanh %460 : vector<2x32xf32>
    %462 = vector.extract_strided_slice %447 {offsets = [0, 96], sizes = [2, 32], strides = [1, 1]} : vector<2x128xf32> to vector<2x32xf32>
    %463 = arith.negf %462 : vector<2x32xf32>
    %464 = math.exp %463 : vector<2x32xf32>
    %cst_112 = arith.constant 1.000000e+00 : f32
    %465 = vector.broadcast %cst_112 : f32 to vector<2x32xf32>
    %466 = arith.addf %465, %464 : vector<2x32xf32>
    %467 = arith.divf %465, %466 : vector<2x32xf32>
    %468 = arith.mulf %459, %399 : vector<2x32xf32>
    %469 = arith.mulf %453, %461 : vector<2x32xf32>
    %470 = arith.addf %468, %469 : vector<2x32xf32>
    %471 = math.tanh %470 : vector<2x32xf32>
    %472 = arith.mulf %467, %471 : vector<2x32xf32>
    %473 = tpu.concatenate %472, %431 in 1 : vector<2x32xf32>, vector<2x32xf32> -> vector<2x64xf32>
    %474 = arith.truncf %473 : vector<2x64xf32> to vector<2x64xbf16>
    %cst_113 = arith.constant dense<0.000000e+00> : vector<2x128xf32>
    %475 = tpu.matmul %474, %4, %cst_113 {dimension_numbers = #tpu.dot_dimension_numbers<[1], [0], [0], [1], [0, 0, 1, 1], [], []>} : vector<2x64xbf16>, vector<64x128xbf16>, vector<2x128xf32> -> vector<2x128xf32>
    %476 = vector.broadcast %5 : vector<1x128xf32> to vector<2x128xf32>
    %477 = arith.addf %475, %476 : vector<2x128xf32>
    %478 = vector.extract_strided_slice %477 {offsets = [0, 0], sizes = [2, 32], strides = [1, 1]} : vector<2x128xf32> to vector<2x32xf32>
    %479 = arith.negf %478 : vector<2x32xf32>
    %480 = math.exp %479 : vector<2x32xf32>
    %cst_114 = arith.constant 1.000000e+00 : f32
    %481 = vector.broadcast %cst_114 : f32 to vector<2x32xf32>
    %482 = arith.addf %481, %480 : vector<2x32xf32>
    %483 = arith.divf %481, %482 : vector<2x32xf32>
    %484 = vector.extract_strided_slice %477 {offsets = [0, 32], sizes = [2, 32], strides = [1, 1]} : vector<2x128xf32> to vector<2x32xf32>
    %485 = arith.negf %484 : vector<2x32xf32>
    %486 = math.exp %485 : vector<2x32xf32>
    %cst_115 = arith.constant 1.000000e+00 : f32
    %487 = vector.broadcast %cst_115 : f32 to vector<2x32xf32>
    %488 = arith.addf %487, %486 : vector<2x32xf32>
    %489 = arith.divf %487, %488 : vector<2x32xf32>
    %490 = vector.extract_strided_slice %477 {offsets = [0, 64], sizes = [2, 32], strides = [1, 1]} : vector<2x128xf32> to vector<2x32xf32>
    %491 = math.tanh %490 : vector<2x32xf32>
    %492 = vector.extract_strided_slice %477 {offsets = [0, 96], sizes = [2, 32], strides = [1, 1]} : vector<2x128xf32> to vector<2x32xf32>
    %493 = arith.negf %492 : vector<2x32xf32>
    %494 = math.exp %493 : vector<2x32xf32>
    %cst_116 = arith.constant 1.000000e+00 : f32
    %495 = vector.broadcast %cst_116 : f32 to vector<2x32xf32>
    %496 = arith.addf %495, %494 : vector<2x32xf32>
    %497 = arith.divf %495, %496 : vector<2x32xf32>
    %498 = arith.mulf %489, %429 : vector<2x32xf32>
    %499 = arith.mulf %483, %491 : vector<2x32xf32>
    %500 = arith.addf %498, %499 : vector<2x32xf32>
    %501 = math.tanh %500 : vector<2x32xf32>
    %502 = arith.mulf %497, %501 : vector<2x32xf32>
    %503 = vector.extract_strided_slice %502 {offsets = [0, 0], sizes = [1, 32], strides = [1, 1]} : vector<2x32xf32> to vector<1x32xf32>
    %c0_i32_117 = arith.constant 0 : i32
    %504 = arith.addi %c0_i32_117, %441 : i32
    %505 = arith.index_cast %504 : i32 to index
    %c0_118 = arith.constant 0 : index
    %506 = vector.load %arg7[%505, %c0_118] : memref<16x32xf32, #tpu.memory_space<vmem>>, vector<1x32xf32>
    tpu.vector_store %arg7[%505, %c0_118], %503 {strides = array<i32>} : memref<16x32xf32, #tpu.memory_space<vmem>>, vector<1x32xf32>,
    %507 = vector.extract_strided_slice %502 {offsets = [1, 0], sizes = [1, 32], strides = [1, 1]} : vector<2x32xf32> to vector<1x32xf32>
    %c8_i32_119 = arith.constant 8 : i32
    %508 = arith.addi %c8_i32_119, %441 : i32
    %509 = arith.index_cast %508 : i32 to index
    %c0_120 = arith.constant 0 : index
    %510 = vector.load %arg7[%509, %c0_120] : memref<16x32xf32, #tpu.memory_space<vmem>>, vector<1x32xf32>
    tpu.vector_store %arg7[%509, %c0_120], %507 {strides = array<i32>} : memref<16x32xf32, #tpu.memory_space<vmem>>, vector<1x32xf32>,
    %c7_i32 = arith.constant 7 : i32
    %c8_i32_121 = arith.constant 8 : i32
    %511 = arith.muli %arg0, %c8_i32_121 : i32
    %512 = arith.addi %511, %c7_i32 : i32
    %513 = arith.index_cast %c7_i32 : i32 to index
    %c0_122 = arith.constant 0 : index
    %c0_123 = arith.constant 0 : index
    %514 = vector.load %arg1[%513, %c0_122, %c0_123] : memref<8x2x128xf32, #tpu.memory_space<vmem>>, vector<1x2x128xf32>
    %515 = vector.shape_cast %514 : vector<1x2x128xf32> to vector<2x128xf32>
    %516 = arith.truncf %472 : vector<2x32xf32> to vector<2x32xbf16>
    %cst_124 = arith.constant dense<0.000000e+00> : vector<2x128xf32>
    %517 = tpu.matmul %516, %3, %cst_124 {dimension_numbers = #tpu.dot_dimension_numbers<[1], [0], [0], [1], [0, 0, 1, 1], [], []>} : vector<2x32xbf16>, vector<32x128xbf16>, vector<2x128xf32> -> vector<2x128xf32>
    %518 = arith.addf %515, %517 : vector<2x128xf32>
    %519 = vector.extract_strided_slice %518 {offsets = [0, 0], sizes = [2, 32], strides = [1, 1]} : vector<2x128xf32> to vector<2x32xf32>
    %520 = arith.negf %519 : vector<2x32xf32>
    %521 = math.exp %520 : vector<2x32xf32>
    %cst_125 = arith.constant 1.000000e+00 : f32
    %522 = vector.broadcast %cst_125 : f32 to vector<2x32xf32>
    %523 = arith.addf %522, %521 : vector<2x32xf32>
    %524 = arith.divf %522, %523 : vector<2x32xf32>
    %525 = vector.extract_strided_slice %518 {offsets = [0, 32], sizes = [2, 32], strides = [1, 1]} : vector<2x128xf32> to vector<2x32xf32>
    %526 = arith.negf %525 : vector<2x32xf32>
    %527 = math.exp %526 : vector<2x32xf32>
    %cst_126 = arith.constant 1.000000e+00 : f32
    %528 = vector.broadcast %cst_126 : f32 to vector<2x32xf32>
    %529 = arith.addf %528, %527 : vector<2x32xf32>
    %530 = arith.divf %528, %529 : vector<2x32xf32>
    %531 = vector.extract_strided_slice %518 {offsets = [0, 64], sizes = [2, 32], strides = [1, 1]} : vector<2x128xf32> to vector<2x32xf32>
    %532 = math.tanh %531 : vector<2x32xf32>
    %533 = vector.extract_strided_slice %518 {offsets = [0, 96], sizes = [2, 32], strides = [1, 1]} : vector<2x128xf32> to vector<2x32xf32>
    %534 = arith.negf %533 : vector<2x32xf32>
    %535 = math.exp %534 : vector<2x32xf32>
    %cst_127 = arith.constant 1.000000e+00 : f32
    %536 = vector.broadcast %cst_127 : f32 to vector<2x32xf32>
    %537 = arith.addf %536, %535 : vector<2x32xf32>
    %538 = arith.divf %536, %537 : vector<2x32xf32>
    %539 = arith.mulf %530, %470 : vector<2x32xf32>
    %540 = arith.mulf %524, %532 : vector<2x32xf32>
    %541 = arith.addf %539, %540 : vector<2x32xf32>
    %542 = math.tanh %541 : vector<2x32xf32>
    %543 = arith.mulf %538, %542 : vector<2x32xf32>
    %544 = tpu.concatenate %543, %502 in 1 : vector<2x32xf32>, vector<2x32xf32> -> vector<2x64xf32>
    %545 = arith.truncf %544 : vector<2x64xf32> to vector<2x64xbf16>
    %cst_128 = arith.constant dense<0.000000e+00> : vector<2x128xf32>
    %546 = tpu.matmul %545, %4, %cst_128 {dimension_numbers = #tpu.dot_dimension_numbers<[1], [0], [0], [1], [0, 0, 1, 1], [], []>} : vector<2x64xbf16>, vector<64x128xbf16>, vector<2x128xf32> -> vector<2x128xf32>
    %547 = vector.broadcast %5 : vector<1x128xf32> to vector<2x128xf32>
    %548 = arith.addf %546, %547 : vector<2x128xf32>
    %549 = vector.extract_strided_slice %548 {offsets = [0, 0], sizes = [2, 32], strides = [1, 1]} : vector<2x128xf32> to vector<2x32xf32>
    %550 = arith.negf %549 : vector<2x32xf32>
    %551 = math.exp %550 : vector<2x32xf32>
    %cst_129 = arith.constant 1.000000e+00 : f32
    %552 = vector.broadcast %cst_129 : f32 to vector<2x32xf32>
    %553 = arith.addf %552, %551 : vector<2x32xf32>
    %554 = arith.divf %552, %553 : vector<2x32xf32>
    %555 = vector.extract_strided_slice %548 {offsets = [0, 32], sizes = [2, 32], strides = [1, 1]} : vector<2x128xf32> to vector<2x32xf32>
    %556 = arith.negf %555 : vector<2x32xf32>
    %557 = math.exp %556 : vector<2x32xf32>
    %cst_130 = arith.constant 1.000000e+00 : f32
    %558 = vector.broadcast %cst_130 : f32 to vector<2x32xf32>
    %559 = arith.addf %558, %557 : vector<2x32xf32>
    %560 = arith.divf %558, %559 : vector<2x32xf32>
    %561 = vector.extract_strided_slice %548 {offsets = [0, 64], sizes = [2, 32], strides = [1, 1]} : vector<2x128xf32> to vector<2x32xf32>
    %562 = math.tanh %561 : vector<2x32xf32>
    %563 = vector.extract_strided_slice %548 {offsets = [0, 96], sizes = [2, 32], strides = [1, 1]} : vector<2x128xf32> to vector<2x32xf32>
    %564 = arith.negf %563 : vector<2x32xf32>
    %565 = math.exp %564 : vector<2x32xf32>
    %cst_131 = arith.constant 1.000000e+00 : f32
    %566 = vector.broadcast %cst_131 : f32 to vector<2x32xf32>
    %567 = arith.addf %566, %565 : vector<2x32xf32>
    %568 = arith.divf %566, %567 : vector<2x32xf32>
    %569 = arith.mulf %560, %500 : vector<2x32xf32>
    %570 = arith.mulf %554, %562 : vector<2x32xf32>
    %571 = arith.addf %569, %570 : vector<2x32xf32>
    %572 = math.tanh %571 : vector<2x32xf32>
    %573 = arith.mulf %568, %572 : vector<2x32xf32>
    %574 = vector.extract_strided_slice %573 {offsets = [0, 0], sizes = [1, 32], strides = [1, 1]} : vector<2x32xf32> to vector<1x32xf32>
    %c0_i32_132 = arith.constant 0 : i32
    %575 = arith.addi %c0_i32_132, %512 : i32
    %576 = arith.index_cast %575 : i32 to index
    %c0_133 = arith.constant 0 : index
    %577 = vector.load %arg7[%576, %c0_133] : memref<16x32xf32, #tpu.memory_space<vmem>>, vector<1x32xf32>
    tpu.vector_store %arg7[%576, %c0_133], %574 {strides = array<i32>} : memref<16x32xf32, #tpu.memory_space<vmem>>, vector<1x32xf32>,
    %578 = vector.extract_strided_slice %573 {offsets = [1, 0], sizes = [1, 32], strides = [1, 1]} : vector<2x32xf32> to vector<1x32xf32>
    %c8_i32_134 = arith.constant 8 : i32
    %579 = arith.addi %c8_i32_134, %512 : i32
    %580 = arith.index_cast %579 : i32 to index
    %c0_135 = arith.constant 0 : index
    %581 = vector.load %arg7[%580, %c0_135] : memref<16x32xf32, #tpu.memory_space<vmem>>, vector<1x32xf32>
    tpu.vector_store %arg7[%580, %c0_135], %578 {strides = array<i32>} : memref<16x32xf32, #tpu.memory_space<vmem>>, vector<1x32xf32>,
    %c8_i32_136 = arith.constant 8 : i32
    %c0_137 = arith.constant 0 : index
    %c0_138 = arith.constant 0 : index
    %c0_139 = arith.constant 0 : index
    %582 = vector.load %arg8[%c0_137, %c0_138, %c0_139] : memref<2x2x32xf32, #tpu.memory_space<vmem>>, vector<1x2x32xf32>
    %583 = vector.shape_cast %582 : vector<1x2x32xf32> to vector<2x32xf32>
    %584 = vector.shape_cast %543 : vector<2x32xf32> to vector<1x2x32xf32>
    tpu.vector_store %arg8[%c0_137, %c0_138, %c0_139], %584 {strides = array<i32>} : memref<2x2x32xf32, #tpu.memory_space<vmem>>, vector<1x2x32xf32>,
    %c0_140 = arith.constant 0 : index
    %c0_141 = arith.constant 0 : index
    %c0_142 = arith.constant 0 : index
    %585 = vector.load %arg9[%c0_140, %c0_141, %c0_142] : memref<2x2x32xf32, #tpu.memory_space<vmem>>, vector<1x2x32xf32>
    %586 = vector.shape_cast %585 : vector<1x2x32xf32> to vector<2x32xf32>
    %587 = vector.shape_cast %541 : vector<2x32xf32> to vector<1x2x32xf32>
    tpu.vector_store %arg9[%c0_140, %c0_141, %c0_142], %587 {strides = array<i32>} : memref<2x2x32xf32, #tpu.memory_space<vmem>>, vector<1x2x32xf32>,
    %c1_143 = arith.constant 1 : index
    %c0_144 = arith.constant 0 : index
    %c0_145 = arith.constant 0 : index
    %588 = vector.load %arg8[%c1_143, %c0_144, %c0_145] : memref<2x2x32xf32, #tpu.memory_space<vmem>>, vector<1x2x32xf32>
    %589 = vector.shape_cast %588 : vector<1x2x32xf32> to vector<2x32xf32>
    %590 = vector.shape_cast %573 : vector<2x32xf32> to vector<1x2x32xf32>
    tpu.vector_store %arg8[%c1_143, %c0_144, %c0_145], %590 {strides = array<i32>} : memref<2x2x32xf32, #tpu.memory_space<vmem>>, vector<1x2x32xf32>,
    %c1_146 = arith.constant 1 : index
    %c0_147 = arith.constant 0 : index
    %c0_148 = arith.constant 0 : index
    %591 = vector.load %arg9[%c1_146, %c0_147, %c0_148] : memref<2x2x32xf32, #tpu.memory_space<vmem>>, vector<1x2x32xf32>
    %592 = vector.shape_cast %591 : vector<1x2x32xf32> to vector<2x32xf32>
    %593 = vector.shape_cast %571 : vector<2x32xf32> to vector<1x2x32xf32>
    tpu.vector_store %arg9[%c1_146, %c0_147, %c0_148], %593 {strides = array<i32>} : memref<2x2x32xf32, #tpu.memory_space<vmem>>, vector<1x2x32xf32>,
    return
  }
  func.func @transform_0(%arg0: i32) -> (i32, i32, i32) {
    %c0_i32 = arith.constant 0 : i32
    %c0_i32_0 = arith.constant 0 : i32
    %c0_i32_1 = arith.constant 0 : i32
    return %arg0, %c0_i32, %c0_i32_0 : i32, i32, i32
  }
  func.func @transform_1(%arg0: i32) -> (i32, i32, i32) {
    %c0_i32 = arith.constant 0 : i32
    %c0_i32_0 = arith.constant 0 : i32
    %c0_i32_1 = arith.constant 0 : i32
    %c0_i32_2 = arith.constant 0 : i32
    return %c0_i32, %c0_i32_0, %c0_i32_1 : i32, i32, i32
  }
  func.func @transform_2(%arg0: i32) -> (i32, i32, i32) {
    %c0_i32 = arith.constant 0 : i32
    %c0_i32_0 = arith.constant 0 : i32
    %c0_i32_1 = arith.constant 0 : i32
    %c0_i32_2 = arith.constant 0 : i32
    return %c0_i32, %c0_i32_0, %c0_i32_1 : i32, i32, i32
  }
  func.func @transform_3(%arg0: i32) -> (i32, i32) {
    %c0_i32 = arith.constant 0 : i32
    %c0_i32_0 = arith.constant 0 : i32
    %c0_i32_1 = arith.constant 0 : i32
    return %c0_i32, %c0_i32_0 : i32, i32
  }
  func.func @transform_4(%arg0: i32) -> (i32, i32) {
    %c0_i32 = arith.constant 0 : i32
    %c0_i32_0 = arith.constant 0 : i32
    %c0_i32_1 = arith.constant 0 : i32
    return %c0_i32, %c0_i32_0 : i32, i32
  }
  func.func @transform_5(%arg0: i32) -> (i32, i32) {
    %c0_i32 = arith.constant 0 : i32
    %c0_i32_0 = arith.constant 0 : i32
    %c0_i32_1 = arith.constant 0 : i32
    return %c0_i32, %c0_i32_0 : i32, i32
  }
  func.func @transform_6(%arg0: i32) -> (i32, i32) {
    %c0_i32 = arith.constant 0 : i32
    %c0_i32_0 = arith.constant 0 : i32
    %c0_i32_1 = arith.constant 0 : i32
    return %c0_i32, %c0_i32_0 : i32, i32
  }
  func.func @transform_7(%arg0: i32) -> (i32, i32, i32) {
    %c0_i32 = arith.constant 0 : i32
    %c0_i32_0 = arith.constant 0 : i32
    %c0_i32_1 = arith.constant 0 : i32
    %c0_i32_2 = arith.constant 0 : i32
    return %c0_i32, %c0_i32_0, %c0_i32_1 : i32, i32, i32
  }
  func.func @transform_8(%arg0: i32) -> (i32, i32, i32) {
    %c0_i32 = arith.constant 0 : i32
    %c0_i32_0 = arith.constant 0 : i32
    %c0_i32_1 = arith.constant 0 : i32
    %c0_i32_2 = arith.constant 0 : i32
    return %c0_i32, %c0_i32_0, %c0_i32_1 : i32, i32, i32
  }
}

</mosaic_0001>

<llo_original>
// kernel: text_generator_forward.5
$region0: #{text_generator_forward.5}
  #allocation0 [shape = 'u32[]', space=smem, size = 0x4, offset = 0x4, fixed_abs, tag = 'smem constant byte address 0x4 - core index']
  #allocation1 [shape = 'u32[144,128]{1,0:T(1,128)}', space=vmem, size = 0x12000, scoped, tag = 'internal scratch']
  %s0 = inlined_call_operand.vmem [shape: f32[16,32], index: 0, kind: input, shape index: {}]
  %s1 = inlined_call_operand.vmem [shape: bf16[32,64], index: 1, kind: input, shape index: {}]
  %s2 = inlined_call_operand.vmem [shape: f32[1,64], index: 2, kind: input, shape index: {}]
  %s3 = inlined_call_operand.hbm [shape: f32[16,64], index: 3, kind: output, shape index: {}]
  %s4 = sld [smem:[#allocation0]]
  $region22: #{text_generator_forward.5} parent=0
    _
  %s6 = ssub.s32 1, %s4
  %s7 = scalar_select 0, %s6, %s4
  $region1: #{text_generator_forward.5} parent=0
    #allocation2 [shape = 'u8[8192]{0}', space=vmem, size = 0x2000, scoped, tag = 'output window, operand 0, single buffered']
    #allocation3 [shape = 's32[1]{0}', space=sflag, size = 0x4, scoped, tag = 'scoped memory for text_generator_forward.5']
    %8 = vsyncpa [#allocation3], 0
    // Predicated region
    $region2: #{text_generator_forward.5} parent=1 // pred_check
      _
    $region3: #{text_generator_forward.5} parent=1 // pred_check_branch
      %10 = sbr.rel (0) target = $region5
    $region4: #{text_generator_forward.5} parent=1 // pred_region
      _
    $region5: #{text_generator_forward.5} parent=1 // pred_fallthru
      _
    // Predicated region
    $region6: #{text_generator_forward.5} parent=1 // pred_check
      _
    $region7: #{text_generator_forward.5} parent=1 // pred_check_branch
      %12 = sbr.rel (0) target = $region9
    $region8: #{text_generator_forward.5} parent=1 // pred_region
      _
    $region9: #{text_generator_forward.5} parent=1 // pred_fallthru
      _
    // Predicated region
    $region10: #{text_generator_forward.5} parent=1 // pred_check
      _
    $region11: #{text_generator_forward.5} parent=1 // pred_check_branch
      %14 = sbr.rel (0) target = $region13
    $region12: #{text_generator_forward.5} parent=1 // pred_region
      _
    $region13: #{text_generator_forward.5} parent=1 // pred_fallthru
      _
    %v16 = vld [vmem:[%s0] sm:$0xff]
    %v17 = vld [vmem:[%s0 + $0x8] sm:$0xff]
    %v18 = vpack.c.bf16 %v17, %v16
    %v19 = vld [vmem:[%s1] sm:$0xf]
    %v20 = vld [vmem:[%s1 + $0x4] sm:$0xf]
    %v21 = vld [vmem:[%s1 + $0x8] sm:$0xf]
    %v22 = vld [vmem:[%s1 + $0xc] sm:$0xf]
    %v23 = vld [vmem:[%s2] sm:$0x1]
    %v25 = vlaneseq
    %v26 = vshrl.u32 %v25, 7
    %v27 = vsub.s32 0, %v26
    %v28 = vrot.slane %v23, %v27
    %v34 = vunpack.c.l.b16 %v19
    %v35 = vunpack.c.l.b16 %v20
    %v36 = vunpack.c.l.b16 %v21
    %v37 = vunpack.c.l.b16 %v22
    %v38 = vpack.c.b16 %v35, %v34
    %v39 = vpack.c.b16 %v37, %v36
    %vm42 = vcmask 261120
    %v44 = vsel %vm42, %v18, 0
    %46 = vmatprep.subr.bf16.mxu0 0
    %47 = vmatpush1.bf16.msra.mxu0 0
    %48 = vmatprep.subr.bf16.mxu0 0
    %49 = vmatpush1.bf16.msra.mxu0 0
    %50 = vmatprep.subr.bf16.mxu0 0
    %51 = vmatpush1.bf16.msra.mxu0 0
    %52 = vmatprep.subr.bf16.mxu0 0
    %53 = vmatpush1.bf16.msra.mxu0 0
    %54 = vmatprep.subr.bf16.mxu0 0
    %55 = vmatpush1.bf16.msra.mxu0 0
    %56 = vmatprep.subr.bf16.mxu0 0
    %57 = vmatpush1.bf16.msra.mxu0 0
    %58 = vmatprep.subr.bf16.mxu0 0
    %59 = vmatpush1.bf16.msra.mxu0 %v39
    %60 = vmatprep.subr.bf16.mxu0 0
    %61 = vmatpush1.bf16.msra.mxu0 %v38
    %62 = vmatprep.subr.bf16.mxu0 0
    %63 = vmatpush2.bf16.msra.mxu0 0
    %64 = vmatprep.subr.bf16.mxu0 0
    %65 = vmatpush2.bf16.msra.mxu0 0
    %66 = vmatprep.subr.bf16.mxu0 0
    %67 = vmatpush2.bf16.msra.mxu0 0
    %68 = vmatprep.subr.bf16.mxu0 0
    %69 = vmatpush2.bf16.msra.mxu0 0
    %70 = vmatprep.subr.bf16.mxu0 0
    %71 = vmatpush2.bf16.msra.mxu0 0
    %72 = vmatprep.subr.bf16.mxu0 0
    %73 = vmatpush2.bf16.msra.mxu0 0
    %74 = vmatprep.subr.bf16.mxu0 0
    %75 = vmatpush2.bf16.msra.mxu0 0
    %76 = vmatprep.subr.bf16.mxu0 0
    %77 = vmatpush2.bf16.msra.mxu0 0
    %78 = vmatprep.mubr.bf16.mxu0 0
    %79 = vmatmul.mubr.bf16.gmra.mxu0 %v44
    %v80 = vpop.f32.mrf.mxu0
    %v81 = vadd.f32 %v28, %v80
    %v82 = vpop.f32.mrf.mxu0
    %v83 = vpop.f32.mrf.mxu0
    %v84 = vadd.f32 %v28, %v83
    %v85 = vpop.f32.mrf.mxu0
    %86 = vdwg.mxu0
    %vm87 = vcmask 523264
    %88 = vst.msk [vmem:[#allocation2] sm:$0xff] %vm87, %v81
    %89 = vst.msk [vmem:[#allocation2 + $0x8] sm:$0xff] %vm87, %v84
    // Predicated region
    $region14: #{text_generator_forward.5} parent=1 // pred_check
      _
    $region15: #{text_generator_forward.5} parent=1 // pred_check_branch
      %91 = sbr.rel (0) target = $region17
    $region16: #{text_generator_forward.5} parent=1 // pred_region
      %s93 = ssub.s32 256, 256
      %94 = vsyncadd [#allocation3], %s93
      %s95 = sshll.u32 [#allocation2], 4
      %s96 = int_to_ptr.vmem [resolvable:$true] %s95
      %101 = dma.vmem_to_hbm [thread:$0]  %s96, 256, %s3, [#allocation3], 128, 128, 8
    $region17: #{text_generator_forward.5} parent=1 // pred_fallthru
      _
    // Predicated region
    $region18: #{text_generator_forward.5} parent=1 // pred_check
      _
    $region19: #{text_generator_forward.5} parent=1 // pred_check_branch
      %103 = sbr.rel (0) target = $region21
    $region20: #{text_generator_forward.5} parent=1 // pred_region
      %104 = dma.done [#allocation3], 256
    $region21: #{text_generator_forward.5} parent=1 // pred_fallthru
      _
    %105 = vsyncpa [#allocation3], 1

// kernel: text_generator_forward.3
$region0: #{text_generator_forward.3}
  #allocation0 [shape = 'u32[]', space=smem, size = 0x4, offset = 0x4, fixed_abs, tag = 'smem constant byte address 0x4 - core index']
  #allocation1 [shape = 'u32[144,128]{1,0:T(1,128)}', space=vmem, size = 0x12000, scoped, tag = 'internal scratch']
  %s0 = inlined_call_operand.vmem [shape: f32[16,32], index: 0, kind: input, shape index: {}]
  %s1 = inlined_call_operand.vmem [shape: bf16[32,128], index: 1, kind: input, shape index: {}]
  %s2 = inlined_call_operand.vmem [shape: f32[1,128], index: 2, kind: input, shape index: {}]
  %s3 = inlined_call_operand.vmem [shape: f32[16,128], index: 3, kind: output, shape index: {}]
  %s4 = sld [smem:[#allocation0]]
  $region22: #{text_generator_forward.3} parent=0
    _
  %s6 = ssub.s32 1, %s4
  %s7 = scalar_select 0, %s6, %s4
  // Predicated region
  $region2: #{text_generator_forward.3} parent=0 // pred_check
    _
  $region3: #{text_generator_forward.3} parent=0 // pred_check_branch
    %9 = sbr.rel (0) target = $region5
  $region4: #{text_generator_forward.3} parent=0 // pred_region
    _
  $region5: #{text_generator_forward.3} parent=0 // pred_fallthru
    _
  // Predicated region
  $region6: #{text_generator_forward.3} parent=0 // pred_check
    _
  $region7: #{text_generator_forward.3} parent=0 // pred_check_branch
    %11 = sbr.rel (0) target = $region9
  $region8: #{text_generator_forward.3} parent=0 // pred_region
    _
  $region9: #{text_generator_forward.3} parent=0 // pred_fallthru
    _
  // Predicated region
  $region10: #{text_generator_forward.3} parent=0 // pred_check
    _
  $region11: #{text_generator_forward.3} parent=0 // pred_check_branch
    %13 = sbr.rel (0) target = $region13
  $region12: #{text_generator_forward.3} parent=0 // pred_region
    _
  $region13: #{text_generator_forward.3} parent=0 // pred_fallthru
    _
  %v15 = vld [vmem:[%s0] sm:$0xff]
  %v16 = vld [vmem:[%s0 + $0x8] sm:$0xff]
  %v17 = vpack.c.bf16 %v16, %v15
  %v18 = vld [vmem:[%s1] sm:$0xf]
  %v19 = vld [vmem:[%s1 + $0x4] sm:$0xf]
  %v20 = vld [vmem:[%s1 + $0x8] sm:$0xf]
  %v21 = vld [vmem:[%s1 + $0xc] sm:$0xf]
  %v22 = vld [vmem:[%s2] sm:$0x1]
  %v24 = vlaneseq
  %v25 = vshrl.u32 %v24, 7
  %v26 = vsub.s32 0, %v25
  %v27 = vrot.slane %v22, %v26
  %v33 = vunpack.c.l.b16 %v18
  %v34 = vunpack.c.l.b16 %v19
  %v35 = vunpack.c.l.b16 %v20
  %v36 = vunpack.c.l.b16 %v21
  %v37 = vpack.c.b16 %v34, %v33
  %v38 = vpack.c.b16 %v36, %v35
  %vm41 = vcmask 261120
  %v43 = vsel %vm41, %v17, 0
  %45 = vmatprep.subr.bf16.mxu0 0
  %46 = vmatpush1.bf16.msra.mxu0 0
  %47 = vmatprep.subr.bf16.mxu0 0
  %48 = vmatpush1.bf16.msra.mxu0 0
  %49 = vmatprep.subr.bf16.mxu0 0
  %50 = vmatpush1.bf16.msra.mxu0 0
  %51 = vmatprep.subr.bf16.mxu0 0
  %52 = vmatpush1.bf16.msra.mxu0 0
  %53 = vmatprep.subr.bf16.mxu0 0
  %54 = vmatpush1.bf16.msra.mxu0 0
  %55 = vmatprep.subr.bf16.mxu0 0
  %56 = vmatpush1.bf16.msra.mxu0 0
  %57 = vmatprep.subr.bf16.mxu0 0
  %58 = vmatpush1.bf16.msra.mxu0 %v38
  %59 = vmatprep.subr.bf16.mxu0 0
  %60 = vmatpush1.bf16.msra.mxu0 %v37
  %61 = vmatprep.subr.bf16.mxu0 0
  %62 = vmatpush2.bf16.msra.mxu0 0
  %63 = vmatprep.subr.bf16.mxu0 0
  %64 = vmatpush2.bf16.msra.mxu0 0
  %65 = vmatprep.subr.bf16.mxu0 0
  %66 = vmatpush2.bf16.msra.mxu0 0
  %67 = vmatprep.subr.bf16.mxu0 0
  %68 = vmatpush2.bf16.msra.mxu0 0
  %69 = vmatprep.subr.bf16.mxu0 0
  %70 = vmatpush2.bf16.msra.mxu0 0
  %71 = vmatprep.subr.bf16.mxu0 0
  %72 = vmatpush2.bf16.msra.mxu0 0
  %73 = vmatprep.subr.bf16.mxu0 0
  %74 = vmatpush2.bf16.msra.mxu0 0
  %75 = vmatprep.subr.bf16.mxu0 0
  %76 = vmatpush2.bf16.msra.mxu0 0
  %77 = vmatprep.mubr.bf16.mxu0 0
  %78 = vmatmul.mubr.bf16.gmra.mxu0 %v43
  %v79 = vpop.f32.mrf.mxu0
  %v80 = vadd.f32 %v27, %v79
  %v81 = vpop.f32.mrf.mxu0
  %v82 = vpop.f32.mrf.mxu0
  %v83 = vadd.f32 %v27, %v82
  %v84 = vpop.f32.mrf.mxu0
  %85 = vdwg.mxu0
  %86 = vst [vmem:[%s3] sm:$0xff] %v80
  %87 = vst [vmem:[%s3 + $0x8] sm:$0xff] %v83
  // Predicated region
  $region14: #{text_generator_forward.3} parent=0 // pred_check
    _
  $region15: #{text_generator_forward.3} parent=0 // pred_check_branch
    %89 = sbr.rel (0) target = $region17
  $region16: #{text_generator_forward.3} parent=0 // pred_region
    _
  $region17: #{text_generator_forward.3} parent=0 // pred_fallthru
    _
  // Predicated region
  $region18: #{text_generator_forward.3} parent=0 // pred_check
    _
  $region19: #{text_generator_forward.3} parent=0 // pred_check_branch
    %91 = sbr.rel (0) target = $region21
  $region20: #{text_generator_forward.3} parent=0 // pred_region
    _
  $region21: #{text_generator_forward.3} parent=0 // pred_fallthru
    _

// kernel: text_generator_forward.4
$region0: #{text_generator_forward.4}
  #allocation0 [shape = 'u32[]', space=smem, size = 0x4, offset = 0x4, fixed_abs, tag = 'smem constant byte address 0x4 - core index']
  #allocation1 [shape = 'u32[144,128]{1,0:T(1,128)}', space=vmem, size = 0x12000, scoped, tag = 'internal scratch']
  %s0 = inlined_call_operand.vmem [shape: f32[8,2,128], index: 0, kind: input, shape index: {}]
  %s1 = inlined_call_operand.vmem [shape: f32[2,2,32], index: 1, kind: input, shape index: {}]
  %s2 = inlined_call_operand.vmem [shape: f32[2,2,32], index: 2, kind: input, shape index: {}]
  %s3 = inlined_call_operand.vmem [shape: bf16[32,128], index: 3, kind: input, shape index: {}]
  %s4 = inlined_call_operand.vmem [shape: bf16[64,128], index: 4, kind: input, shape index: {}]
  %s5 = inlined_call_operand.vmem [shape: f32[1,128], index: 5, kind: input, shape index: {}]
  %s6 = inlined_call_operand.vmem [shape: f32[16,32], index: 6, kind: output, shape index: {0}]
  %s7 = inlined_call_operand.hbm [shape: f32[2,2,32], index: 7, kind: output, shape index: {1}]
  %s8 = inlined_call_operand.hbm [shape: f32[2,2,32], index: 8, kind: output, shape index: {2}]
  %9 = xla_tuple %s6, %s7, %s8
  %s10 = sld [smem:[#allocation0]]
  $region54: #{text_generator_forward.4} parent=0
    _
  %s12 = ssub.s32 1, %s10
  %s13 = scalar_select 0, %s12, %s10
  $region1: #{text_generator_forward.4} parent=0
    #allocation2 [shape = 'u8[2048]{0}', space=vmem, size = 0x800, scoped, tag = 'output window, operand 1, single buffered']
    #allocation3 [shape = 's32[1]{0}', space=sflag, size = 0x4, scoped, tag = 'scoped memory for text_generator_forward.4']
    #allocation4 [shape = 'u8[2048]{0}', space=vmem, size = 0x800, scoped, tag = 'output window, operand 2, single buffered']
    #allocation5 [shape = 's32[1]{0}', space=sflag, size = 0x4, scoped, tag = 'scoped memory for text_generator_forward.4']
    %14 = vsyncpa [#allocation3], 0
    %15 = vsyncpa [#allocation5], 0
    // Predicated region
    $region2: #{text_generator_forward.4} parent=1 // pred_check
      _
    $region3: #{text_generator_forward.4} parent=1 // pred_check_branch
      %17 = sbr.rel (0) target = $region5
    $region4: #{text_generator_forward.4} parent=1 // pred_region
      _
    $region5: #{text_generator_forward.4} parent=1 // pred_fallthru
      _
    // Predicated region
    $region6: #{text_generator_forward.4} parent=1 // pred_check
      _
    $region7: #{text_generator_forward.4} parent=1 // pred_check_branch
      %19 = sbr.rel (0) target = $region9
    $region8: #{text_generator_forward.4} parent=1 // pred_region
      _
    $region9: #{text_generator_forward.4} parent=1 // pred_fallthru
      _
    // Predicated region
    $region10: #{text_generator_forward.4} parent=1 // pred_check
      _
    $region11: #{text_generator_forward.4} parent=1 // pred_check_branch
      %21 = sbr.rel (0) target = $region13
    $region12: #{text_generator_forward.4} parent=1 // pred_region
      _
    $region13: #{text_generator_forward.4} parent=1 // pred_fallthru
      _
    // Predicated region
    $region14: #{text_generator_forward.4} parent=1 // pred_check
      _
    $region15: #{text_generator_forward.4} parent=1 // pred_check_branch
      %23 = sbr.rel (0) target = $region17
    $region16: #{text_generator_forward.4} parent=1 // pred_region
      _
    $region17: #{text_generator_forward.4} parent=1 // pred_fallthru
      _
    // Predicated region
    $region18: #{text_generator_forward.4} parent=1 // pred_check
      _
    $region19: #{text_generator_forward.4} parent=1 // pred_check_branch
      %25 = sbr.rel (0) target = $region21
    $region20: #{text_generator_forward.4} parent=1 // pred_region
      _
    $region21: #{text_generator_forward.4} parent=1 // pred_fallthru
      _
    // Predicated region
    $region22: #{text_generator_forward.4} parent=1 // pred_check
      _
    $region23: #{text_generator_forward.4} parent=1 // pred_check_branch
      %27 = sbr.rel (0) target = $region25
    $region24: #{text_generator_forward.4} parent=1 // pred_region
      _
    $region25: #{text_generator_forward.4} parent=1 // pred_fallthru
      _
    %p29 = scmp.eq.s32.totalorder 0, 0
    // Predicated region
    $region26: #{text_generator_forward.4} parent=1 // pred_check
      %p30 = pneg %p29
    $region27: #{text_generator_forward.4} parent=1 // pred_check_branch
      %32 = sbr.rel (%p30) target = $region29
    $region28: #{text_generator_forward.4} parent=1 // pred_region
      %v33 = vld [vmem:[%s1] sm:$0x3]
      %v34 = vld [vmem:[%s1 + $0x2] sm:$0x3]
      %vm35 = vcmask 254976
      %36 = vst.msk [vmem:[#allocation2] sm:$0x3] %vm35, %v33
      %37 = vst.msk [vmem:[#allocation2 + $0x2] sm:$0x3] %vm35, %v34
      %v38 = vld [vmem:[%s2] sm:$0x3]
      %v39 = vld [vmem:[%s2 + $0x2] sm:$0x3]
      %40 = vst.msk [vmem:[#allocation4] sm:$0x3] %vm35, %v38
      %41 = vst.msk [vmem:[#allocation4 + $0x2] sm:$0x3] %vm35, %v39
    $region29: #{text_generator_forward.4} parent=1 // pred_fallthru
      _
    %v42 = vld [vmem:[%s3] sm:$0xf]
    %v43 = vld [vmem:[%s3 + $0x4] sm:$0xf]
    %v44 = vld [vmem:[%s3 + $0x8] sm:$0xf]
    %v45 = vld [vmem:[%s3 + $0xc] sm:$0xf]
    %v46 = vld [vmem:[%s4] sm:$0xf]
    %v47 = vld [vmem:[%s4 + $0x4] sm:$0xf]
    %v48 = vld [vmem:[%s4 + $0x8] sm:$0xf]
    %v49 = vld [vmem:[%s4 + $0xc] sm:$0xf]
    %v50 = vld [vmem:[%s4 + $0x10] sm:$0xf]
    %v51 = vld [vmem:[%s4 + $0x14] sm:$0xf]
    %v52 = vld [vmem:[%s4 + $0x18] sm:$0xf]
    %v53 = vld [vmem:[%s4 + $0x1c] sm:$0xf]
    %v54 = vld [vmem:[%s5] sm:$0x1]
    %v55 = vld [vmem:[#allocation2] sm:$0x3]
    %s56 = scalar_lea.vmem [#allocation2], 2
    %v57 = vld [vmem:[%s56] sm:$0x3]
    %v58 = vld [vmem:[#allocation4] sm:$0x3]
    %s59 = scalar_lea.vmem [#allocation4], 2
    %v60 = vld [vmem:[%s59] sm:$0x3]
    %s61 = smul.u32 0, 8
    %v62 = vld [vmem:[%s0] sm:$0x3]
    %v63 = vpack.c.bf16 %v55, %v55
    %v68 = vunpack.c.l.b16 %v42
    %v69 = vunpack.c.l.b16 %v43
    %v70 = vunpack.c.l.b16 %v44
    %v71 = vunpack.c.l.b16 %v45
    %v72 = vpack.c.b16 %v69, %v68
    %v73 = vpack.c.b16 %v71, %v70
    %vm76 = vcmask 261120
    %v78 = vsel %vm76, %v63, 0
    %80 = vmatprep.subr.bf16.mxu0 0
    %81 = vmatpush1.bf16.msra.mxu0 0
    %82 = vmatprep.subr.bf16.mxu0 0
    %83 = vmatpush1.bf16.msra.mxu0 0
    %84 = vmatprep.subr.bf16.mxu0 0
    %85 = vmatpush1.bf16.msra.mxu0 0
    %86 = vmatprep.subr.bf16.mxu0 0
    %87 = vmatpush1.bf16.msra.mxu0 0
    %88 = vmatprep.subr.bf16.mxu0 0
    %89 = vmatpush1.bf16.msra.mxu0 0
    %90 = vmatprep.subr.bf16.mxu0 0
    %91 = vmatpush1.bf16.msra.mxu0 0
    %92 = vmatprep.subr.bf16.mxu0 0
    %93 = vmatpush1.bf16.msra.mxu0 %v73
    %94 = vmatprep.subr.bf16.mxu0 0
    %95 = vmatpush1.bf16.msra.mxu0 %v72
    %96 = vmatprep.subr.bf16.mxu0 0
    %97 = vmatpush2.bf16.msra.mxu0 0
    %98 = vmatprep.subr.bf16.mxu0 0
    %99 = vmatpush2.bf16.msra.mxu0 0
    %100 = vmatprep.subr.bf16.mxu0 0
    %101 = vmatpush2.bf16.msra.mxu0 0
    %102 = vmatprep.subr.bf16.mxu0 0
    %103 = vmatpush2.bf16.msra.mxu0 0
    %104 = vmatprep.subr.bf16.mxu0 0
    %105 = vmatpush2.bf16.msra.mxu0 0
    %106 = vmatprep.subr.bf16.mxu0 0
    %107 = vmatpush2.bf16.msra.mxu0 0
    %108 = vmatprep.subr.bf16.mxu0 0
    %109 = vmatpush2.bf16.msra.mxu0 0
    %110 = vmatprep.subr.bf16.mxu0 0
    %111 = vmatpush2.bf16.msra.mxu0 0
    %112 = vmatprep.mubr.bf16.mxu0 0
    %113 = vmatmul.mubr.bf16.gmra.mxu0 %v78
    %v114 = vpop.f32.mrf.mxu0
    %v115 = vadd.f32 0.0, %v114
    %v116 = vpop.f32.mrf.mxu0
    %v117 = vpop.f32.mrf.mxu0
    %v118 = vpop.f32.mrf.mxu0
    %119 = vdwg.mxu0
    %v120 = vadd.f32 %v62, %v115
    %v121 = vxor.u32 %v120, 2147483648
    %v122 = vmul.f32 %v121, 1.442695
    %v123 = vpow.pop %v122
    %v124 = vadd.f32 %v123, 1.0
    %v125 = vrcp.pop %v124
    %v126 = vmul.f32 1.0, %v125
    %v127 = vtanh.pop %v120
    %129 = vrot.lane.b32.xlu0 %v58, 32
    %v130 = vpop.permute.xlu0 %129
    %v132 = vmul.f32 %v126, %v130
    %134 = vrot.lane.b32.xlu0 %v127, 64
    %v135 = vpop.permute.xlu0 %134
    %v137 = vmul.f32 %v126, %v135
    %139 = vrot.lane.b32.xlu0 %v137, 32
    %v140 = vpop.permute.xlu0 %139
    %v142 = vadd.f32 %v132, %v140
    %v143 = vtanh.pop %v142
    %145 = vrot.lane.b32.xlu0 %v143, 64
    %v146 = vpop.permute.xlu0 %145
    %v148 = vmul.f32 %v126, %v146
    %150 = vrot.lane.b32.xlu0 %v148, 32
    %v151 = vpop.permute.xlu0 %150
    %154 = vrot.lane.b32.xlu0 %v57, 32
    %v155 = vpop.permute.xlu0 %154
    %v157 = vsel %vm76, %v151, %v155
    %v158 = vpack.c.bf16 %v157, %v157
    %v160 = vlaneseq
    %v161 = vshrl.u32 %v160, 7
    %v162 = vsub.s32 0, %v161
    %v163 = vrot.slane %v54, %v162
    %v173 = vunpack.c.l.b16 %v46
    %v174 = vunpack.c.l.b16 %v47
    %v175 = vunpack.c.l.b16 %v48
    %v176 = vunpack.c.l.b16 %v49
    %v177 = vunpack.c.l.b16 %v50
    %v178 = vunpack.c.l.b16 %v51
    %v179 = vunpack.c.l.b16 %v52
    %v180 = vunpack.c.l.b16 %v53
    %v181 = vpack.c.b16 %v174, %v173
    %v182 = vpack.c.b16 %v176, %v175
    %v183 = vpack.c.b16 %v178, %v177
    %v184 = vpack.c.b16 %v180, %v179
    %vm189 = vcmask 523264
    %v191 = vsel %vm189, %v158, 0
    %193 = vmatprep.subr.bf16.mxu0 0
    %194 = vmatpush1.bf16.msra.mxu0 0
    %195 = vmatprep.subr.bf16.mxu0 0
    %196 = vmatpush1.bf16.msra.mxu0 0
    %197 = vmatprep.subr.bf16.mxu0 0
    %198 = vmatpush1.bf16.msra.mxu0 0
    %199 = vmatprep.subr.bf16.mxu0 0
    %200 = vmatpush1.bf16.msra.mxu0 0
    %201 = vmatprep.subr.bf16.mxu0 0
    %202 = vmatpush1.bf16.msra.mxu0 %v184
    %203 = vmatprep.subr.bf16.mxu0 0
    %204 = vmatpush1.bf16.msra.mxu0 %v183
    %205 = vmatprep.subr.bf16.mxu0 0
    %206 = vmatpush1.bf16.msra.mxu0 %v182
    %207 = vmatprep.subr.bf16.mxu0 0
    %208 = vmatpush1.bf16.msra.mxu0 %v181
    %209 = vmatprep.subr.bf16.mxu0 0
    %210 = vmatpush2.bf16.msra.mxu0 0
    %211 = vmatprep.subr.bf16.mxu0 0
    %212 = vmatpush2.bf16.msra.mxu0 0
    %213 = vmatprep.subr.bf16.mxu0 0
    %214 = vmatpush2.bf16.msra.mxu0 0
    %215 = vmatprep.subr.bf16.mxu0 0
    %216 = vmatpush2.bf16.msra.mxu0 0
    %217 = vmatprep.subr.bf16.mxu0 0
    %218 = vmatpush2.bf16.msra.mxu0 0
    %219 = vmatprep.subr.bf16.mxu0 0
    %220 = vmatpush2.bf16.msra.mxu0 0
    %221 = vmatprep.subr.bf16.mxu0 0
    %222 = vmatpush2.bf16.msra.mxu0 0
    %223 = vmatprep.subr.bf16.mxu0 0
    %224 = vmatpush2.bf16.msra.mxu0 0
    %225 = vmatprep.mubr.bf16.mxu0 0
    %226 = vmatmul.mubr.bf16.gmra.mxu0 %v191
    %v227 = vpop.f32.mrf.mxu0
    %v228 = vadd.f32 %v163, %v227
    %v229 = vpop.f32.mrf.mxu0
    %v230 = vpop.f32.mrf.mxu0
    %v231 = vpop.f32.mrf.mxu0
    %232 = vdwg.mxu0
    %v233 = vxor.u32 %v228, 2147483648
    %v234 = vmul.f32 %v233, 1.442695
    %v235 = vpow.pop %v234
    %v236 = vadd.f32 %v235, 1.0
    %v237 = vrcp.pop %v236
    %v238 = vmul.f32 1.0, %v237
    %v239 = vtanh.pop %v228
    %241 = vrot.lane.b32.xlu0 %v60, 32
    %v242 = vpop.permute.xlu0 %241
    %v244 = vmul.f32 %v238, %v242
    %246 = vrot.lane.b32.xlu0 %v239, 64
    %v247 = vpop.permute.xlu0 %246
    %v249 = vmul.f32 %v238, %v247
    %251 = vrot.lane.b32.xlu0 %v249, 32
    %v252 = vpop.permute.xlu0 %251
    %v254 = vadd.f32 %v244, %v252
    %v255 = vtanh.pop %v254
    %257 = vrot.lane.b32.xlu0 %v255, 64
    %v258 = vpop.permute.xlu0 %257
    %v260 = vmul.f32 %v238, %v258
    %262 = vrot.lane.b32.xlu0 %v260, 32
    %v263 = vpop.permute.xlu0 %262
    %s265 = scalar_lea.vmem %s6, %s61
    %vm266 = vcmask 253952
    %267 = vst.msk [vmem:[%s265] sm:$0x1] %vm266, %v263
    %s268 = sadd.s32 %s61, 8
    %s269 = scalar_lea.vmem %s6, %s268
    %vm270 = vcmask 254977
    %271 = vst.msk [vmem:[%s269 - $0x1] sm:$0x2] %vm270, %v263
    %s272 = sadd.s32 %s61, 1
    %s273 = scalar_lea.vmem %s0, 2
    %v274 = vld [vmem:[%s273] sm:$0x3]
    %v275 = vpack.c.bf16 %v148, %v148
    %277 = vrot.lane.b32.xlu0 %v275, 32
    %v278 = vpop.permute.xlu0 %277
    %v280 = vsel %vm76, %v278, 0
    %282 = vmatprep.subr.bf16.mxu0 0
    %283 = vmatpush1.bf16.msra.mxu0 0
    %284 = vmatprep.subr.bf16.mxu0 0
    %285 = vmatpush1.bf16.msra.mxu0 0
    %286 = vmatprep.subr.bf16.mxu0 0
    %287 = vmatpush1.bf16.msra.mxu0 0
    %288 = vmatprep.subr.bf16.mxu0 0
    %289 = vmatpush1.bf16.msra.mxu0 0
    %290 = vmatprep.subr.bf16.mxu0 0
    %291 = vmatpush1.bf16.msra.mxu0 0
    %292 = vmatprep.subr.bf16.mxu0 0
    %293 = vmatpush1.bf16.msra.mxu0 0
    %294 = vmatprep.subr.bf16.mxu0 0
    %295 = vmatpush1.bf16.msra.mxu0 %v73
    %296 = vmatprep.subr.bf16.mxu0 0
    %297 = vmatpush1.bf16.msra.mxu0 %v72
    %298 = vmatprep.subr.bf16.mxu0 0
    %299 = vmatpush2.bf16.msra.mxu0 0
    %300 = vmatprep.subr.bf16.mxu0 0
    %301 = vmatpush2.bf16.msra.mxu0 0
    %302 = vmatprep.subr.bf16.mxu0 0
    %303 = vmatpush2.bf16.msra.mxu0 0
    %304 = vmatprep.subr.bf16.mxu0 0
    %305 = vmatpush2.bf16.msra.mxu0 0
    %306 = vmatprep.subr.bf16.mxu0 0
    %307 = vmatpush2.bf16.msra.mxu0 0
    %308 = vmatprep.subr.bf16.mxu0 0
    %309 = vmatpush2.bf16.msra.mxu0 0
    %310 = vmatprep.subr.bf16.mxu0 0
    %311 = vmatpush2.bf16.msra.mxu0 0
    %312 = vmatprep.subr.bf16.mxu0 0
    %313 = vmatpush2.bf16.msra.mxu0 0
    %314 = vmatprep.mubr.bf16.mxu0 0
    %315 = vmatmul.mubr.bf16.gmra.mxu0 %v280
    %v316 = vpop.f32.mrf.mxu0
    %v317 = vadd.f32 0.0, %v316
    %v318 = vpop.f32.mrf.mxu0
    %v319 = vpop.f32.mrf.mxu0
    %v320 = vpop.f32.mrf.mxu0
    %321 = vdwg.mxu0
    %v322 = vadd.f32 %v274, %v317
    %v323 = vxor.u32 %v322, 2147483648
    %v324 = vmul.f32 %v323, 1.442695
    %v325 = vpow.pop %v324
    %v326 = vadd.f32 %v325, 1.0
    %v327 = vrcp.pop %v326
    %v328 = vmul.f32 1.0, %v327
    %v329 = vtanh.pop %v322
    %v330 = vmul.f32 %v328, %v142
    %332 = vrot.lane.b32.xlu0 %v329, 64
    %v333 = vpop.permute.xlu0 %332
    %v335 = vmul.f32 %v328, %v333
    %337 = vrot.lane.b32.xlu0 %v335, 32
    %v338 = vpop.permute.xlu0 %337
    %v340 = vadd.f32 %v330, %v338
    %v341 = vtanh.pop %v340
    %343 = vrot.lane.b32.xlu0 %v341, 64
    %v344 = vpop.permute.xlu0 %343
    %v346 = vmul.f32 %v328, %v344
    %348 = vrot.lane.b32.xlu0 %v346, 32
    %v349 = vpop.permute.xlu0 %348
    %351 = vrot.lane.b32.xlu0 %v260, 64
    %v352 = vpop.permute.xlu0 %351
    %v354 = vsel %vm76, %v349, %v352
    %v355 = vpack.c.bf16 %v354, %v354
    %v357 = vsel %vm189, %v355, 0
    %359 = vmatprep.subr.bf16.mxu0 0
    %360 = vmatpush1.bf16.msra.mxu0 0
    %361 = vmatprep.subr.bf16.mxu0 0
    %362 = vmatpush1.bf16.msra.mxu0 0
    %363 = vmatprep.subr.bf16.mxu0 0
    %364 = vmatpush1.bf16.msra.mxu0 0
    %365 = vmatprep.subr.bf16.mxu0 0
    %366 = vmatpush1.bf16.msra.mxu0 0
    %367 = vmatprep.subr.bf16.mxu0 0
    %368 = vmatpush1.bf16.msra.mxu0 %v184
    %369 = vmatprep.subr.bf16.mxu0 0
    %370 = vmatpush1.bf16.msra.mxu0 %v183
    %371 = vmatprep.subr.bf16.mxu0 0
    %372 = vmatpush1.bf16.msra.mxu0 %v182
    %373 = vmatprep.subr.bf16.mxu0 0
    %374 = vmatpush1.bf16.msra.mxu0 %v181
    %375 = vmatprep.subr.bf16.mxu0 0
    %376 = vmatpush2.bf16.msra.mxu0 0
    %377 = vmatprep.subr.bf16.mxu0 0
    %378 = vmatpush2.bf16.msra.mxu0 0
    %379 = vmatprep.subr.bf16.mxu0 0
    %380 = vmatpush2.bf16.msra.mxu0 0
    %381 = vmatprep.subr.bf16.mxu0 0
    %382 = vmatpush2.bf16.msra.mxu0 0
    %383 = vmatprep.subr.bf16.mxu0 0
    %384 = vmatpush2.bf16.msra.mxu0 0
    %385 = vmatprep.subr.bf16.mxu0 0
    %386 = vmatpush2.bf16.msra.mxu0 0
    %387 = vmatprep.subr.bf16.mxu0 0
    %388 = vmatpush2.bf16.msra.mxu0 0
    %389 = vmatprep.subr.bf16.mxu0 0
    %390 = vmatpush2.bf16.msra.mxu0 0
    %391 = vmatprep.mubr.bf16.mxu0 0
    %392 = vmatmul.mubr.bf16.gmra.mxu0 %v357
    %v393 = vpop.f32.mrf.mxu0
    %v394 = vadd.f32 %v163, %v393
    %v395 = vpop.f32.mrf.mxu0
    %v396 = vpop.f32.mrf.mxu0
    %v397 = vpop.f32.mrf.mxu0
    %398 = vdwg.mxu0
    %v399 = vxor.u32 %v394, 2147483648
    %v400 = vmul.f32 %v399, 1.442695
    %v401 = vpow.pop %v400
    %v402 = vadd.f32 %v401, 1.0
    %v403 = vrcp.pop %v402
    %v404 = vmul.f32 1.0, %v403
    %v405 = vtanh.pop %v394
    %v406 = vmul.f32 %v404, %v254
    %408 = vrot.lane.b32.xlu0 %v405, 64
    %v409 = vpop.permute.xlu0 %408
    %v411 = vmul.f32 %v404, %v409
    %413 = vrot.lane.b32.xlu0 %v411, 32
    %v414 = vpop.permute.xlu0 %413
    %v416 = vadd.f32 %v406, %v414
    %v417 = vtanh.pop %v416
    %419 = vrot.lane.b32.xlu0 %v417, 64
    %v420 = vpop.permute.xlu0 %419
    %v422 = vmul.f32 %v404, %v420
    %424 = vrot.lane.b32.xlu0 %v422, 32
    %v425 = vpop.permute.xlu0 %424
    %s427 = scalar_lea.vmem %s6, %s272
    %428 = vst.msk [vmem:[%s427] sm:$0x1] %vm266, %v425
    %s429 = sadd.s32 %s61, 9
    %s430 = scalar_lea.vmem %s6, %s429
    %431 = vst.msk [vmem:[%s430 - $0x1] sm:$0x2] %vm270, %v425
    %s432 = sadd.s32 %s61, 2
    %s433 = scalar_lea.vmem %s0, 4
    %v434 = vld [vmem:[%s433] sm:$0x3]
    %v435 = vpack.c.bf16 %v346, %v346
    %437 = vrot.lane.b32.xlu0 %v435, 32
    %v438 = vpop.permute.xlu0 %437
    %v440 = vsel %vm76, %v438, 0
    %442 = vmatprep.subr.bf16.mxu0 0
    %443 = vmatpush1.bf16.msra.mxu0 0
    %444 = vmatprep.subr.bf16.mxu0 0
    %445 = vmatpush1.bf16.msra.mxu0 0
    %446 = vmatprep.subr.bf16.mxu0 0
    %447 = vmatpush1.bf16.msra.mxu0 0
    %448 = vmatprep.subr.bf16.mxu0 0
    %449 = vmatpush1.bf16.msra.mxu0 0
    %450 = vmatprep.subr.bf16.mxu0 0
    %451 = vmatpush1.bf16.msra.mxu0 0
    %452 = vmatprep.subr.bf16.mxu0 0
    %453 = vmatpush1.bf16.msra.mxu0 0
    %454 = vmatprep.subr.bf16.mxu0 0
    %455 = vmatpush1.bf16.msra.mxu0 %v73
    %456 = vmatprep.subr.bf16.mxu0 0
    %457 = vmatpush1.bf16.msra.mxu0 %v72
    %458 = vmatprep.subr.bf16.mxu0 0
    %459 = vmatpush2.bf16.msra.mxu0 0
    %460 = vmatprep.subr.bf16.mxu0 0
    %461 = vmatpush2.bf16.msra.mxu0 0
    %462 = vmatprep.subr.bf16.mxu0 0
    %463 = vmatpush2.bf16.msra.mxu0 0
    %464 = vmatprep.subr.bf16.mxu0 0
    %465 = vmatpush2.bf16.msra.mxu0 0
    %466 = vmatprep.subr.bf16.mxu0 0
    %467 = vmatpush2.bf16.msra.mxu0 0
    %468 = vmatprep.subr.bf16.mxu0 0
    %469 = vmatpush2.bf16.msra.mxu0 0
    %470 = vmatprep.subr.bf16.mxu0 0
    %471 = vmatpush2.bf16.msra.mxu0 0
    %472 = vmatprep.subr.bf16.mxu0 0
    %473 = vmatpush2.bf16.msra.mxu0 0
    %474 = vmatprep.mubr.bf16.mxu0 0
    %475 = vmatmul.mubr.bf16.gmra.mxu0 %v440
    %v476 = vpop.f32.mrf.mxu0
    %v477 = vadd.f32 0.0, %v476
    %v478 = vpop.f32.mrf.mxu0
    %v479 = vpop.f32.mrf.mxu0
    %v480 = vpop.f32.mrf.mxu0
    %481 = vdwg.mxu0
    %v482 = vadd.f32 %v434, %v477
    %v483 = vxor.u32 %v482, 2147483648
    %v484 = vmul.f32 %v483, 1.442695
    %v485 = vpow.pop %v484
    %v486 = vadd.f32 %v485, 1.0
    %v487 = vrcp.pop %v486
    %v488 = vmul.f32 1.0, %v487
    %v489 = vtanh.pop %v482
    %v490 = vmul.f32 %v488, %v340
    %492 = vrot.lane.b32.xlu0 %v489, 64
    %v493 = vpop.permute.xlu0 %492
    %v495 = vmul.f32 %v488, %v493
    %497 = vrot.lane.b32.xlu0 %v495, 32
    %v498 = vpop.permute.xlu0 %497
    %v500 = vadd.f32 %v490, %v498
    %v501 = vtanh.pop %v500
    %503 = vrot.lane.b32.xlu0 %v501, 64
    %v504 = vpop.permute.xlu0 %503
    %v506 = vmul.f32 %v488, %v504
    %508 = vrot.lane.b32.xlu0 %v506, 32
    %v509 = vpop.permute.xlu0 %508
    %511 = vrot.lane.b32.xlu0 %v422, 64
    %v512 = vpop.permute.xlu0 %511
    %v514 = vsel %vm76, %v509, %v512
    %v515 = vpack.c.bf16 %v514, %v514
    %v517 = vsel %vm189, %v515, 0
    %519 = vmatprep.subr.bf16.mxu0 0
    %520 = vmatpush1.bf16.msra.mxu0 0
    %521 = vmatprep.subr.bf16.mxu0 0
    %522 = vmatpush1.bf16.msra.mxu0 0
    %523 = vmatprep.subr.bf16.mxu0 0
    %524 = vmatpush1.bf16.msra.mxu0 0
    %525 = vmatprep.subr.bf16.mxu0 0
    %526 = vmatpush1.bf16.msra.mxu0 0
    %527 = vmatprep.subr.bf16.mxu0 0
    %528 = vmatpush1.bf16.msra.mxu0 %v184
    %529 = vmatprep.subr.bf16.mxu0 0
    %530 = vmatpush1.bf16.msra.mxu0 %v183
    %531 = vmatprep.subr.bf16.mxu0 0
    %532 = vmatpush1.bf16.msra.mxu0 %v182
    %533 = vmatprep.subr.bf16.mxu0 0
    %534 = vmatpush1.bf16.msra.mxu0 %v181
    %535 = vmatprep.subr.bf16.mxu0 0
    %536 = vmatpush2.bf16.msra.mxu0 0
    %537 = vmatprep.subr.bf16.mxu0 0
    %538 = vmatpush2.bf16.msra.mxu0 0
    %539 = vmatprep.subr.bf16.mxu0 0
    %540 = vmatpush2.bf16.msra.mxu0 0
    %541 = vmatprep.subr.bf16.mxu0 0
    %542 = vmatpush2.bf16.msra.mxu0 0
    %543 = vmatprep.subr.bf16.mxu0 0
    %544 = vmatpush2.bf16.msra.mxu0 0
    %545 = vmatprep.subr.bf16.mxu0 0
    %546 = vmatpush2.bf16.msra.mxu0 0
    %547 = vmatprep.subr.bf16.mxu0 0
    %548 = vmatpush2.bf16.msra.mxu0 0
    %549 = vmatprep.subr.bf16.mxu0 0
    %550 = vmatpush2.bf16.msra.mxu0 0
    %551 = vmatprep.mubr.bf16.mxu0 0
    %552 = vmatmul.mubr.bf16.gmra.mxu0 %v517
    %v553 = vpop.f32.mrf.mxu0
    %v554 = vadd.f32 %v163, %v553
    %v555 = vpop.f32.mrf.mxu0
    %v556 = vpop.f32.mrf.mxu0
    %v557 = vpop.f32.mrf.mxu0
    %558 = vdwg.mxu0
    %v559 = vxor.u32 %v554, 2147483648
    %v560 = vmul.f32 %v559, 1.442695
    %v561 = vpow.pop %v560
    %v562 = vadd.f32 %v561, 1.0
    %v563 = vrcp.pop %v562
    %v564 = vmul.f32 1.0, %v563
    %v565 = vtanh.pop %v554
    %v566 = vmul.f32 %v564, %v416
    %568 = vrot.lane.b32.xlu0 %v565, 64
    %v569 = vpop.permute.xlu0 %568
    %v571 = vmul.f32 %v564, %v569
    %573 = vrot.lane.b32.xlu0 %v571, 32
    %v574 = vpop.permute.xlu0 %573
    %v576 = vadd.f32 %v566, %v574
    %v577 = vtanh.pop %v576
    %579 = vrot.lane.b32.xlu0 %v577, 64
    %v580 = vpop.permute.xlu0 %579
    %v582 = vmul.f32 %v564, %v580
    %584 = vrot.lane.b32.xlu0 %v582, 32
    %v585 = vpop.permute.xlu0 %584
    %s587 = scalar_lea.vmem %s6, %s432
    %588 = vst.msk [vmem:[%s587] sm:$0x1] %vm266, %v585
    %s589 = sadd.s32 %s61, 10
    %s590 = scalar_lea.vmem %s6, %s589
    %591 = vst.msk [vmem:[%s590 - $0x1] sm:$0x2] %vm270, %v585
    %s592 = sadd.s32 %s61, 3
    %s593 = scalar_lea.vmem %s0, 6
    %v594 = vld [vmem:[%s593] sm:$0x3]
    %v595 = vpack.c.bf16 %v506, %v506
    %597 = vrot.lane.b32.xlu0 %v595, 32
    %v598 = vpop.permute.xlu0 %597
    %v600 = vsel %vm76, %v598, 0
    %602 = vmatprep.subr.bf16.mxu0 0
    %603 = vmatpush1.bf16.msra.mxu0 0
    %604 = vmatprep.subr.bf16.mxu0 0
    %605 = vmatpush1.bf16.msra.mxu0 0
    %606 = vmatprep.subr.bf16.mxu0 0
    %607 = vmatpush1.bf16.msra.mxu0 0
    %608 = vmatprep.subr.bf16.mxu0 0
    %609 = vmatpush1.bf16.msra.mxu0 0
    %610 = vmatprep.subr.bf16.mxu0 0
    %611 = vmatpush1.bf16.msra.mxu0 0
    %612 = vmatprep.subr.bf16.mxu0 0
    %613 = vmatpush1.bf16.msra.mxu0 0
    %614 = vmatprep.subr.bf16.mxu0 0
    %615 = vmatpush1.bf16.msra.mxu0 %v73
    %616 = vmatprep.subr.bf16.mxu0 0
    %617 = vmatpush1.bf16.msra.mxu0 %v72
    %618 = vmatprep.subr.bf16.mxu0 0
    %619 = vmatpush2.bf16.msra.mxu0 0
    %620 = vmatprep.subr.bf16.mxu0 0
    %621 = vmatpush2.bf16.msra.mxu0 0
    %622 = vmatprep.subr.bf16.mxu0 0
    %623 = vmatpush2.bf16.msra.mxu0 0
    %624 = vmatprep.subr.bf16.mxu0 0
    %625 = vmatpush2.bf16.msra.mxu0 0
    %626 = vmatprep.subr.bf16.mxu0 0
    %627 = vmatpush2.bf16.msra.mxu0 0
    %628 = vmatprep.subr.bf16.mxu0 0
    %629 = vmatpush2.bf16.msra.mxu0 0
    %630 = vmatprep.subr.bf16.mxu0 0
    %631 = vmatpush2.bf16.msra.mxu0 0
    %632 = vmatprep.subr.bf16.mxu0 0
    %633 = vmatpush2.bf16.msra.mxu0 0
    %634 = vmatprep.mubr.bf16.mxu0 0
    %635 = vmatmul.mubr.bf16.gmra.mxu0 %v600
    %v636 = vpop.f32.mrf.mxu0
    %v637 = vadd.f32 0.0, %v636
    %v638 = vpop.f32.mrf.mxu0
    %v639 = vpop.f32.mrf.mxu0
    %v640 = vpop.f32.mrf.mxu0
    %641 = vdwg.mxu0
    %v642 = vadd.f32 %v594, %v637
    %v643 = vxor.u32 %v642, 2147483648
    %v644 = vmul.f32 %v643, 1.442695
    %v645 = vpow.pop %v644
    %v646 = vadd.f32 %v645, 1.0
    %v647 = vrcp.pop %v646
    %v648 = vmul.f32 1.0, %v647
    %v649 = vtanh.pop %v642
    %v650 = vmul.f32 %v648, %v500
    %652 = vrot.lane.b32.xlu0 %v649, 64
    %v653 = vpop.permute.xlu0 %652
    %v655 = vmul.f32 %v648, %v653
    %657 = vrot.lane.b32.xlu0 %v655, 32
    %v658 = vpop.permute.xlu0 %657
    %v660 = vadd.f32 %v650, %v658
    %v661 = vtanh.pop %v660
    %663 = vrot.lane.b32.xlu0 %v661, 64
    %v664 = vpop.permute.xlu0 %663
    %v666 = vmul.f32 %v648, %v664
    %668 = vrot.lane.b32.xlu0 %v666, 32
    %v669 = vpop.permute.xlu0 %668
    %671 = vrot.lane.b32.xlu0 %v582, 64
    %v672 = vpop.permute.xlu0 %671
    %v674 = vsel %vm76, %v669, %v672
    %v675 = vpack.c.bf16 %v674, %v674
    %v677 = vsel %vm189, %v675, 0
    %679 = vmatprep.subr.bf16.mxu0 0
    %680 = vmatpush1.bf16.msra.mxu0 0
    %681 = vmatprep.subr.bf16.mxu0 0
    %682 = vmatpush1.bf16.msra.mxu0 0
    %683 = vmatprep.subr.bf16.mxu0 0
    %684 = vmatpush1.bf16.msra.mxu0 0
    %685 = vmatprep.subr.bf16.mxu0 0
    %686 = vmatpush1.bf16.msra.mxu0 0
    %687 = vmatprep.subr.bf16.mxu0 0
    %688 = vmatpush1.bf16.msra.mxu0 %v184
    %689 = vmatprep.subr.bf16.mxu0 0
    %690 = vmatpush1.bf16.msra.mxu0 %v183
    %691 = vmatprep.subr.bf16.mxu0 0
    %692 = vmatpush1.bf16.msra.mxu0 %v182
    %693 = vmatprep.subr.bf16.mxu0 0
    %694 = vmatpush1.bf16.msra.mxu0 %v181
    %695 = vmatprep.subr.bf16.mxu0 0
    %696 = vmatpush2.bf16.msra.mxu0 0
    %697 = vmatprep.subr.bf16.mxu0 0
    %698 = vmatpush2.bf16.msra.mxu0 0
    %699 = vmatprep.subr.bf16.mxu0 0
    %700 = vmatpush2.bf16.msra.mxu0 0
    %701 = vmatprep.subr.bf16.mxu0 0
    %702 = vmatpush2.bf16.msra.mxu0 0
    %703 = vmatprep.subr.bf16.mxu0 0
    %704 = vmatpush2.bf16.msra.mxu0 0
    %705 = vmatprep.subr.bf16.mxu0 0
    %706 = vmatpush2.bf16.msra.mxu0 0
    %707 = vmatprep.subr.bf16.mxu0 0
    %708 = vmatpush2.bf16.msra.mxu0 0
    %709 = vmatprep.subr.bf16.mxu0 0
    %710 = vmatpush2.bf16.msra.mxu0 0
    %711 = vmatprep.mubr.bf16.mxu0 0
    %712 = vmatmul.mubr.bf16.gmra.mxu0 %v677
    %v713 = vpop.f32.mrf.mxu0
    %v714 = vadd.f32 %v163, %v713
    %v715 = vpop.f32.mrf.mxu0
    %v716 = vpop.f32.mrf.mxu0
    %v717 = vpop.f32.mrf.mxu0
    %718 = vdwg.mxu0
    %v719 = vxor.u32 %v714, 2147483648
    %v720 = vmul.f32 %v719, 1.442695
    %v721 = vpow.pop %v720
    %v722 = vadd.f32 %v721, 1.0
    %v723 = vrcp.pop %v722
    %v724 = vmul.f32 1.0, %v723
    %v725 = vtanh.pop %v714
    %v726 = vmul.f32 %v724, %v576
    %728 = vrot.lane.b32.xlu0 %v725, 64
    %v729 = vpop.permute.xlu0 %728
    %v731 = vmul.f32 %v724, %v729
    %733 = vrot.lane.b32.xlu0 %v731, 32
    %v734 = vpop.permute.xlu0 %733
    %v736 = vadd.f32 %v726, %v734
    %v737 = vtanh.pop %v736
    %739 = vrot.lane.b32.xlu0 %v737, 64
    %v740 = vpop.permute.xlu0 %739
    %v742 = vmul.f32 %v724, %v740
    %744 = vrot.lane.b32.xlu0 %v742, 32
    %v745 = vpop.permute.xlu0 %744
    %s747 = scalar_lea.vmem %s6, %s592
    %748 = vst.msk [vmem:[%s747] sm:$0x1] %vm266, %v745
    %s749 = sadd.s32 %s61, 11
    %s750 = scalar_lea.vmem %s6, %s749
    %751 = vst.msk [vmem:[%s750 - $0x1] sm:$0x2] %vm270, %v745
    %s752 = sadd.s32 %s61, 4
    %s753 = scalar_lea.vmem %s0, 8
    %v754 = vld [vmem:[%s753] sm:$0x3]
    %v755 = vpack.c.bf16 %v666, %v666
    %757 = vrot.lane.b32.xlu0 %v755, 32
    %v758 = vpop.permute.xlu0 %757
    %v760 = vsel %vm76, %v758, 0
    %762 = vmatprep.subr.bf16.mxu0 0
    %763 = vmatpush1.bf16.msra.mxu0 0
    %764 = vmatprep.subr.bf16.mxu0 0
    %765 = vmatpush1.bf16.msra.mxu0 0
    %766 = vmatprep.subr.bf16.mxu0 0
    %767 = vmatpush1.bf16.msra.mxu0 0
    %768 = vmatprep.subr.bf16.mxu0 0
    %769 = vmatpush1.bf16.msra.mxu0 0
    %770 = vmatprep.subr.bf16.mxu0 0
    %771 = vmatpush1.bf16.msra.mxu0 0
    %772 = vmatprep.subr.bf16.mxu0 0
    %773 = vmatpush1.bf16.msra.mxu0 0
    %774 = vmatprep.subr.bf16.mxu0 0
    %775 = vmatpush1.bf16.msra.mxu0 %v73
    %776 = vmatprep.subr.bf16.mxu0 0
    %777 = vmatpush1.bf16.msra.mxu0 %v72
    %778 = vmatprep.subr.bf16.mxu0 0
    %779 = vmatpush2.bf16.msra.mxu0 0
    %780 = vmatprep.subr.bf16.mxu0 0
    %781 = vmatpush2.bf16.msra.mxu0 0
    %782 = vmatprep.subr.bf16.mxu0 0
    %783 = vmatpush2.bf16.msra.mxu0 0
    %784 = vmatprep.subr.bf16.mxu0 0
    %785 = vmatpush2.bf16.msra.mxu0 0
    %786 = vmatprep.subr.bf16.mxu0 0
    %787 = vmatpush2.bf16.msra.mxu0 0
    %788 = vmatprep.subr.bf16.mxu0 0
    %789 = vmatpush2.bf16.msra.mxu0 0
    %790 = vmatprep.subr.bf16.mxu0 0
    %791 = vmatpush2.bf16.msra.mxu0 0
    %792 = vmatprep.subr.bf16.mxu0 0
    %793 = vmatpush2.bf16.msra.mxu0 0
    %794 = vmatprep.mubr.bf16.mxu0 0
    %795 = vmatmul.mubr.bf16.gmra.mxu0 %v760
    %v796 = vpop.f32.mrf.mxu0
    %v797 = vadd.f32 0.0, %v796
    %v798 = vpop.f32.mrf.mxu0
    %v799 = vpop.f32.mrf.mxu0
    %v800 = vpop.f32.mrf.mxu0
    %801 = vdwg.mxu0
    %v802 = vadd.f32 %v754, %v797
    %v803 = vxor.u32 %v802, 2147483648
    %v804 = vmul.f32 %v803, 1.442695
    %v805 = vpow.pop %v804
    %v806 = vadd.f32 %v805, 1.0
    %v807 = vrcp.pop %v806
    %v808 = vmul.f32 1.0, %v807
    %v809 = vtanh.pop %v802
    %v810 = vmul.f32 %v808, %v660
    %812 = vrot.lane.b32.xlu0 %v809, 64
    %v813 = vpop.permute.xlu0 %812
    %v815 = vmul.f32 %v808, %v813
    %817 = vrot.lane.b32.xlu0 %v815, 32
    %v818 = vpop.permute.xlu0 %817
    %v820 = vadd.f32 %v810, %v818
    %v821 = vtanh.pop %v820
    %823 = vrot.lane.b32.xlu0 %v821, 64
    %v824 = vpop.permute.xlu0 %823
    %v826 = vmul.f32 %v808, %v824
    %828 = vrot.lane.b32.xlu0 %v826, 32
    %v829 = vpop.permute.xlu0 %828
    %831 = vrot.lane.b32.xlu0 %v742, 64
    %v832 = vpop.permute.xlu0 %831
    %v834 = vsel %vm76, %v829, %v832
    %v835 = vpack.c.bf16 %v834, %v834
    %v837 = vsel %vm189, %v835, 0
    %839 = vmatprep.subr.bf16.mxu0 0
    %840 = vmatpush1.bf16.msra.mxu0 0
    %841 = vmatprep.subr.bf16.mxu0 0
    %842 = vmatpush1.bf16.msra.mxu0 0
    %843 = vmatprep.subr.bf16.mxu0 0
    %844 = vmatpush1.bf16.msra.mxu0 0
    %845 = vmatprep.subr.bf16.mxu0 0
    %846 = vmatpush1.bf16.msra.mxu0 0
    %847 = vmatprep.subr.bf16.mxu0 0
    %848 = vmatpush1.bf16.msra.mxu0 %v184
    %849 = vmatprep.subr.bf16.mxu0 0
    %850 = vmatpush1.bf16.msra.mxu0 %v183
    %851 = vmatprep.subr.bf16.mxu0 0
    %852 = vmatpush1.bf16.msra.mxu0 %v182
    %853 = vmatprep.subr.bf16.mxu0 0
    %854 = vmatpush1.bf16.msra.mxu0 %v181
    %855 = vmatprep.subr.bf16.mxu0 0
    %856 = vmatpush2.bf16.msra.mxu0 0
    %857 = vmatprep.subr.bf16.mxu0 0
    %858 = vmatpush2.bf16.msra.mxu0 0
    %859 = vmatprep.subr.bf16.mxu0 0
    %860 = vmatpush2.bf16.msra.mxu0 0
    %861 = vmatprep.subr.bf16.mxu0 0
    %862 = vmatpush2.bf16.msra.mxu0 0
    %863 = vmatprep.subr.bf16.mxu0 0
    %864 = vmatpush2.bf16.msra.mxu0 0
    %865 = vmatprep.subr.bf16.mxu0 0
    %866 = vmatpush2.bf16.msra.mxu0 0
    %867 = vmatprep.subr.bf16.mxu0 0
    %868 = vmatpush2.bf16.msra.mxu0 0
    %869 = vmatprep.subr.bf16.mxu0 0
    %870 = vmatpush2.bf16.msra.mxu0 0
    %871 = vmatprep.mubr.bf16.mxu0 0
    %872 = vmatmul.mubr.bf16.gmra.mxu0 %v837
    %v873 = vpop.f32.mrf.mxu0
    %v874 = vadd.f32 %v163, %v873
    %v875 = vpop.f32.mrf.mxu0
    %v876 = vpop.f32.mrf.mxu0
    %v877 = vpop.f32.mrf.mxu0
    %878 = vdwg.mxu0
    %v879 = vxor.u32 %v874, 2147483648
    %v880 = vmul.f32 %v879, 1.442695
    %v881 = vpow.pop %v880
    %v882 = vadd.f32 %v881, 1.0
    %v883 = vrcp.pop %v882
    %v884 = vmul.f32 1.0, %v883
    %v885 = vtanh.pop %v874
    %v886 = vmul.f32 %v884, %v736
    %888 = vrot.lane.b32.xlu0 %v885, 64
    %v889 = vpop.permute.xlu0 %888
    %v891 = vmul.f32 %v884, %v889
    %893 = vrot.lane.b32.xlu0 %v891, 32
    %v894 = vpop.permute.xlu0 %893
    %v896 = vadd.f32 %v886, %v894
    %v897 = vtanh.pop %v896
    %899 = vrot.lane.b32.xlu0 %v897, 64
    %v900 = vpop.permute.xlu0 %899
    %v902 = vmul.f32 %v884, %v900
    %904 = vrot.lane.b32.xlu0 %v902, 32
    %v905 = vpop.permute.xlu0 %904
    %s907 = scalar_lea.vmem %s6, %s752
    %908 = vst.msk [vmem:[%s907] sm:$0x1] %vm266, %v905
    %s909 = sadd.s32 %s61, 12
    %s910 = scalar_lea.vmem %s6, %s909
    %911 = vst.msk [vmem:[%s910 - $0x1] sm:$0x2] %vm270, %v905
    %s912 = sadd.s32 %s61, 5
    %s913 = scalar_lea.vmem %s0, 10
    %v914 = vld [vmem:[%s913] sm:$0x3]
    %v915 = vpack.c.bf16 %v826, %v826
    %917 = vrot.lane.b32.xlu0 %v915, 32
    %v918 = vpop.permute.xlu0 %917
    %v920 = vsel %vm76, %v918, 0
    %922 = vmatprep.subr.bf16.mxu0 0
    %923 = vmatpush1.bf16.msra.mxu0 0
    %924 = vmatprep.subr.bf16.mxu0 0
    %925 = vmatpush1.bf16.msra.mxu0 0
    %926 = vmatprep.subr.bf16.mxu0 0
    %927 = vmatpush1.bf16.msra.mxu0 0
    %928 = vmatprep.subr.bf16.mxu0 0
    %929 = vmatpush1.bf16.msra.mxu0 0
    %930 = vmatprep.subr.bf16.mxu0 0
    %931 = vmatpush1.bf16.msra.mxu0 0
    %932 = vmatprep.subr.bf16.mxu0 0
    %933 = vmatpush1.bf16.msra.mxu0 0
    %934 = vmatprep.subr.bf16.mxu0 0
    %935 = vmatpush1.bf16.msra.mxu0 %v73
    %936 = vmatprep.subr.bf16.mxu0 0
    %937 = vmatpush1.bf16.msra.mxu0 %v72
    %938 = vmatprep.subr.bf16.mxu0 0
    %939 = vmatpush2.bf16.msra.mxu0 0
    %940 = vmatprep.subr.bf16.mxu0 0
    %941 = vmatpush2.bf16.msra.mxu0 0
    %942 = vmatprep.subr.bf16.mxu0 0
    %943 = vmatpush2.bf16.msra.mxu0 0
    %944 = vmatprep.subr.bf16.mxu0 0
    %945 = vmatpush2.bf16.msra.mxu0 0
    %946 = vmatprep.subr.bf16.mxu0 0
    %947 = vmatpush2.bf16.msra.mxu0 0
    %948 = vmatprep.subr.bf16.mxu0 0
    %949 = vmatpush2.bf16.msra.mxu0 0
    %950 = vmatprep.subr.bf16.mxu0 0
    %951 = vmatpush2.bf16.msra.mxu0 0
    %952 = vmatprep.subr.bf16.mxu0 0
    %953 = vmatpush2.bf16.msra.mxu0 0
    %954 = vmatprep.mubr.bf16.mxu0 0
    %955 = vmatmul.mubr.bf16.gmra.mxu0 %v920
    %v956 = vpop.f32.mrf.mxu0
    %v957 = vadd.f32 0.0, %v956
    %v958 = vpop.f32.mrf.mxu0
    %v959 = vpop.f32.mrf.mxu0
    %v960 = vpop.f32.mrf.mxu0
    %961 = vdwg.mxu0
    %v962 = vadd.f32 %v914, %v957
    %v963 = vxor.u32 %v962, 2147483648
    %v964 = vmul.f32 %v963, 1.442695
    %v965 = vpow.pop %v964
    %v966 = vadd.f32 %v965, 1.0
    %v967 = vrcp.pop %v966
    %v968 = vmul.f32 1.0, %v967
    %v969 = vtanh.pop %v962
    %v970 = vmul.f32 %v968, %v820
    %972 = vrot.lane.b32.xlu0 %v969, 64
    %v973 = vpop.permute.xlu0 %972
    %v975 = vmul.f32 %v968, %v973
    %977 = vrot.lane.b32.xlu0 %v975, 32
    %v978 = vpop.permute.xlu0 %977
    %v980 = vadd.f32 %v970, %v978
    %v981 = vtanh.pop %v980
    %983 = vrot.lane.b32.xlu0 %v981, 64
    %v984 = vpop.permute.xlu0 %983
    %v986 = vmul.f32 %v968, %v984
    %988 = vrot.lane.b32.xlu0 %v986, 32
    %v989 = vpop.permute.xlu0 %988
    %991 = vrot.lane.b32.xlu0 %v902, 64
    %v992 = vpop.permute.xlu0 %991
    %v994 = vsel %vm76, %v989, %v992
    %v995 = vpack.c.bf16 %v994, %v994
    %v997 = vsel %vm189, %v995, 0
    %999 = vmatprep.subr.bf16.mxu0 0
    %1000 = vmatpush1.bf16.msra.mxu0 0
    %1001 = vmatprep.subr.bf16.mxu0 0
    %1002 = vmatpush1.bf16.msra.mxu0 0
    %1003 = vmatprep.subr.bf16.mxu0 0
    %1004 = vmatpush1.bf16.msra.mxu0 0
    %1005 = vmatprep.subr.bf16.mxu0 0
    %1006 = vmatpush1.bf16.msra.mxu0 0
    %1007 = vmatprep.subr.bf16.mxu0 0
    %1008 = vmatpush1.bf16.msra.mxu0 %v184
    %1009 = vmatprep.subr.bf16.mxu0 0
    %1010 = vmatpush1.bf16.msra.mxu0 %v183
    %1011 = vmatprep.subr.bf16.mxu0 0
    %1012 = vmatpush1.bf16.msra.mxu0 %v182
    %1013 = vmatprep.subr.bf16.mxu0 0
    %1014 = vmatpush1.bf16.msra.mxu0 %v181
    %1015 = vmatprep.subr.bf16.mxu0 0
    %1016 = vmatpush2.bf16.msra.mxu0 0
    %1017 = vmatprep.subr.bf16.mxu0 0
    %1018 = vmatpush2.bf16.msra.mxu0 0
    %1019 = vmatprep.subr.bf16.mxu0 0
    %1020 = vmatpush2.bf16.msra.mxu0 0
    %1021 = vmatprep.subr.bf16.mxu0 0
    %1022 = vmatpush2.bf16.msra.mxu0 0
    %1023 = vmatprep.subr.bf16.mxu0 0
    %1024 = vmatpush2.bf16.msra.mxu0 0
    %1025 = vmatprep.subr.bf16.mxu0 0
    %1026 = vmatpush2.bf16.msra.mxu0 0
    %1027 = vmatprep.subr.bf16.mxu0 0
    %1028 = vmatpush2.bf16.msra.mxu0 0
    %1029 = vmatprep.subr.bf16.mxu0 0
    %1030 = vmatpush2.bf16.msra.mxu0 0
    %1031 = vmatprep.mubr.bf16.mxu0 0
    %1032 = vmatmul.mubr.bf16.gmra.mxu0 %v997
    %v1033 = vpop.f32.mrf.mxu0
    %v1034 = vadd.f32 %v163, %v1033
    %v1035 = vpop.f32.mrf.mxu0
    %v1036 = vpop.f32.mrf.mxu0
    %v1037 = vpop.f32.mrf.mxu0
    %1038 = vdwg.mxu0
    %v1039 = vxor.u32 %v1034, 2147483648
    %v1040 = vmul.f32 %v1039, 1.442695
    %v1041 = vpow.pop %v1040
    %v1042 = vadd.f32 %v1041, 1.0
    %v1043 = vrcp.pop %v1042
    %v1044 = vmul.f32 1.0, %v1043
    %v1045 = vtanh.pop %v1034
    %v1046 = vmul.f32 %v1044, %v896
    %1048 = vrot.lane.b32.xlu0 %v1045, 64
    %v1049 = vpop.permute.xlu0 %1048
    %v1051 = vmul.f32 %v1044, %v1049
    %1053 = vrot.lane.b32.xlu0 %v1051, 32
    %v1054 = vpop.permute.xlu0 %1053
    %v1056 = vadd.f32 %v1046, %v1054
    %v1057 = vtanh.pop %v1056
    %1059 = vrot.lane.b32.xlu0 %v1057, 64
    %v1060 = vpop.permute.xlu0 %1059
    %v1062 = vmul.f32 %v1044, %v1060
    %1064 = vrot.lane.b32.xlu0 %v1062, 32
    %v1065 = vpop.permute.xlu0 %1064
    %s1067 = scalar_lea.vmem %s6, %s912
    %1068 = vst.msk [vmem:[%s1067] sm:$0x1] %vm266, %v1065
    %s1069 = sadd.s32 %s61, 13
    %s1070 = scalar_lea.vmem %s6, %s1069
    %1071 = vst.msk [vmem:[%s1070 - $0x1] sm:$0x2] %vm270, %v1065
    %s1072 = sadd.s32 %s61, 6
    %s1073 = scalar_lea.vmem %s0, 12
    %v1074 = vld [vmem:[%s1073] sm:$0x3]
    %v1075 = vpack.c.bf16 %v986, %v986
    %1077 = vrot.lane.b32.xlu0 %v1075, 32
    %v1078 = vpop.permute.xlu0 %1077
    %v1080 = vsel %vm76, %v1078, 0
    %1082 = vmatprep.subr.bf16.mxu0 0
    %1083 = vmatpush1.bf16.msra.mxu0 0
    %1084 = vmatprep.subr.bf16.mxu0 0
    %1085 = vmatpush1.bf16.msra.mxu0 0
    %1086 = vmatprep.subr.bf16.mxu0 0
    %1087 = vmatpush1.bf16.msra.mxu0 0
    %1088 = vmatprep.subr.bf16.mxu0 0
    %1089 = vmatpush1.bf16.msra.mxu0 0
    %1090 = vmatprep.subr.bf16.mxu0 0
    %1091 = vmatpush1.bf16.msra.mxu0 0
    %1092 = vmatprep.subr.bf16.mxu0 0
    %1093 = vmatpush1.bf16.msra.mxu0 0
    %1094 = vmatprep.subr.bf16.mxu0 0
    %1095 = vmatpush1.bf16.msra.mxu0 %v73
    %1096 = vmatprep.subr.bf16.mxu0 0
    %1097 = vmatpush1.bf16.msra.mxu0 %v72
    %1098 = vmatprep.subr.bf16.mxu0 0
    %1099 = vmatpush2.bf16.msra.mxu0 0
    %1100 = vmatprep.subr.bf16.mxu0 0
    %1101 = vmatpush2.bf16.msra.mxu0 0
    %1102 = vmatprep.subr.bf16.mxu0 0
    %1103 = vmatpush2.bf16.msra.mxu0 0
    %1104 = vmatprep.subr.bf16.mxu0 0
    %1105 = vmatpush2.bf16.msra.mxu0 0
    %1106 = vmatprep.subr.bf16.mxu0 0
    %1107 = vmatpush2.bf16.msra.mxu0 0
    %1108 = vmatprep.subr.bf16.mxu0 0
    %1109 = vmatpush2.bf16.msra.mxu0 0
    %1110 = vmatprep.subr.bf16.mxu0 0
    %1111 = vmatpush2.bf16.msra.mxu0 0
    %1112 = vmatprep.subr.bf16.mxu0 0
    %1113 = vmatpush2.bf16.msra.mxu0 0
    %1114 = vmatprep.mubr.bf16.mxu0 0
    %1115 = vmatmul.mubr.bf16.gmra.mxu0 %v1080
    %v1116 = vpop.f32.mrf.mxu0
    %v1117 = vadd.f32 0.0, %v1116
    %v1118 = vpop.f32.mrf.mxu0
    %v1119 = vpop.f32.mrf.mxu0
    %v1120 = vpop.f32.mrf.mxu0
    %1121 = vdwg.mxu0
    %v1122 = vadd.f32 %v1074, %v1117
    %v1123 = vxor.u32 %v1122, 2147483648
    %v1124 = vmul.f32 %v1123, 1.442695
    %v1125 = vpow.pop %v1124
    %v1126 = vadd.f32 %v1125, 1.0
    %v1127 = vrcp.pop %v1126
    %v1128 = vmul.f32 1.0, %v1127
    %v1129 = vtanh.pop %v1122
    %v1130 = vmul.f32 %v1128, %v980
    %1132 = vrot.lane.b32.xlu0 %v1129, 64
    %v1133 = vpop.permute.xlu0 %1132
    %v1135 = vmul.f32 %v1128, %v1133
    %1137 = vrot.lane.b32.xlu0 %v1135, 32
    %v1138 = vpop.permute.xlu0 %1137
    %v1140 = vadd.f32 %v1130, %v1138
    %v1141 = vtanh.pop %v1140
    %1143 = vrot.lane.b32.xlu0 %v1141, 64
    %v1144 = vpop.permute.xlu0 %1143
    %v1146 = vmul.f32 %v1128, %v1144
    %1148 = vrot.lane.b32.xlu0 %v1146, 32
    %v1149 = vpop.permute.xlu0 %1148
    %1151 = vrot.lane.b32.xlu0 %v1062, 64
    %v1152 = vpop.permute.xlu0 %1151
    %v1154 = vsel %vm76, %v1149, %v1152
    %v1155 = vpack.c.bf16 %v1154, %v1154
    %v1157 = vsel %vm189, %v1155, 0
    %1159 = vmatprep.subr.bf16.mxu0 0
    %1160 = vmatpush1.bf16.msra.mxu0 0
    %1161 = vmatprep.subr.bf16.mxu0 0
    %1162 = vmatpush1.bf16.msra.mxu0 0
    %1163 = vmatprep.subr.bf16.mxu0 0
    %1164 = vmatpush1.bf16.msra.mxu0 0
    %1165 = vmatprep.subr.bf16.mxu0 0
    %1166 = vmatpush1.bf16.msra.mxu0 0
    %1167 = vmatprep.subr.bf16.mxu0 0
    %1168 = vmatpush1.bf16.msra.mxu0 %v184
    %1169 = vmatprep.subr.bf16.mxu0 0
    %1170 = vmatpush1.bf16.msra.mxu0 %v183
    %1171 = vmatprep.subr.bf16.mxu0 0
    %1172 = vmatpush1.bf16.msra.mxu0 %v182
    %1173 = vmatprep.subr.bf16.mxu0 0
    %1174 = vmatpush1.bf16.msra.mxu0 %v181
    %1175 = vmatprep.subr.bf16.mxu0 0
    %1176 = vmatpush2.bf16.msra.mxu0 0
    %1177 = vmatprep.subr.bf16.mxu0 0
    %1178 = vmatpush2.bf16.msra.mxu0 0
    %1179 = vmatprep.subr.bf16.mxu0 0
    %1180 = vmatpush2.bf16.msra.mxu0 0
    %1181 = vmatprep.subr.bf16.mxu0 0
    %1182 = vmatpush2.bf16.msra.mxu0 0
    %1183 = vmatprep.subr.bf16.mxu0 0
    %1184 = vmatpush2.bf16.msra.mxu0 0
    %1185 = vmatprep.subr.bf16.mxu0 0
    %1186 = vmatpush2.bf16.msra.mxu0 0
    %1187 = vmatprep.subr.bf16.mxu0 0
    %1188 = vmatpush2.bf16.msra.mxu0 0
    %1189 = vmatprep.subr.bf16.mxu0 0
    %1190 = vmatpush2.bf16.msra.mxu0 0
    %1191 = vmatprep.mubr.bf16.mxu0 0
    %1192 = vmatmul.mubr.bf16.gmra.mxu0 %v1157
    %v1193 = vpop.f32.mrf.mxu0
    %v1194 = vadd.f32 %v163, %v1193
    %v1195 = vpop.f32.mrf.mxu0
    %v1196 = vpop.f32.mrf.mxu0
    %v1197 = vpop.f32.mrf.mxu0
    %1198 = vdwg.mxu0
    %v1199 = vxor.u32 %v1194, 2147483648
    %v1200 = vmul.f32 %v1199, 1.442695
    %v1201 = vpow.pop %v1200
    %v1202 = vadd.f32 %v1201, 1.0
    %v1203 = vrcp.pop %v1202
    %v1204 = vmul.f32 1.0, %v1203
    %v1205 = vtanh.pop %v1194
    %v1206 = vmul.f32 %v1204, %v1056
    %1208 = vrot.lane.b32.xlu0 %v1205, 64
    %v1209 = vpop.permute.xlu0 %1208
    %v1211 = vmul.f32 %v1204, %v1209
    %1213 = vrot.lane.b32.xlu0 %v1211, 32
    %v1214 = vpop.permute.xlu0 %1213
    %v1216 = vadd.f32 %v1206, %v1214
    %v1217 = vtanh.pop %v1216
    %1219 = vrot.lane.b32.xlu0 %v1217, 64
    %v1220 = vpop.permute.xlu0 %1219
    %v1222 = vmul.f32 %v1204, %v1220
    %1224 = vrot.lane.b32.xlu0 %v1222, 32
    %v1225 = vpop.permute.xlu0 %1224
    %s1227 = scalar_lea.vmem %s6, %s1072
    %1228 = vst.msk [vmem:[%s1227] sm:$0x1] %vm266, %v1225
    %s1229 = sadd.s32 %s61, 14
    %s1230 = scalar_lea.vmem %s6, %s1229
    %1231 = vst.msk [vmem:[%s1230 - $0x1] sm:$0x2] %vm270, %v1225
    %s1232 = sadd.s32 %s61, 7
    %s1233 = scalar_lea.vmem %s0, 14
    %v1234 = vld [vmem:[%s1233] sm:$0x3]
    %v1235 = vpack.c.bf16 %v1146, %v1146
    %1237 = vrot.lane.b32.xlu0 %v1235, 32
    %v1238 = vpop.permute.xlu0 %1237
    %v1240 = vsel %vm76, %v1238, 0
    %1242 = vmatprep.subr.bf16.mxu0 0
    %1243 = vmatpush1.bf16.msra.mxu0 0
    %1244 = vmatprep.subr.bf16.mxu0 0
    %1245 = vmatpush1.bf16.msra.mxu0 0
    %1246 = vmatprep.subr.bf16.mxu0 0
    %1247 = vmatpush1.bf16.msra.mxu0 0
    %1248 = vmatprep.subr.bf16.mxu0 0
    %1249 = vmatpush1.bf16.msra.mxu0 0
    %1250 = vmatprep.subr.bf16.mxu0 0
    %1251 = vmatpush1.bf16.msra.mxu0 0
    %1252 = vmatprep.subr.bf16.mxu0 0
    %1253 = vmatpush1.bf16.msra.mxu0 0
    %1254 = vmatprep.subr.bf16.mxu0 0
    %1255 = vmatpush1.bf16.msra.mxu0 %v73
    %1256 = vmatprep.subr.bf16.mxu0 0
    %1257 = vmatpush1.bf16.msra.mxu0 %v72
    %1258 = vmatprep.subr.bf16.mxu0 0
    %1259 = vmatpush2.bf16.msra.mxu0 0
    %1260 = vmatprep.subr.bf16.mxu0 0
    %1261 = vmatpush2.bf16.msra.mxu0 0
    %1262 = vmatprep.subr.bf16.mxu0 0
    %1263 = vmatpush2.bf16.msra.mxu0 0
    %1264 = vmatprep.subr.bf16.mxu0 0
    %1265 = vmatpush2.bf16.msra.mxu0 0
    %1266 = vmatprep.subr.bf16.mxu0 0
    %1267 = vmatpush2.bf16.msra.mxu0 0
    %1268 = vmatprep.subr.bf16.mxu0 0
    %1269 = vmatpush2.bf16.msra.mxu0 0
    %1270 = vmatprep.subr.bf16.mxu0 0
    %1271 = vmatpush2.bf16.msra.mxu0 0
    %1272 = vmatprep.subr.bf16.mxu0 0
    %1273 = vmatpush2.bf16.msra.mxu0 0
    %1274 = vmatprep.mubr.bf16.mxu0 0
    %1275 = vmatmul.mubr.bf16.gmra.mxu0 %v1240
    %v1276 = vpop.f32.mrf.mxu0
    %v1277 = vadd.f32 0.0, %v1276
    %v1278 = vpop.f32.mrf.mxu0
    %v1279 = vpop.f32.mrf.mxu0
    %v1280 = vpop.f32.mrf.mxu0
    %1281 = vdwg.mxu0
    %v1282 = vadd.f32 %v1234, %v1277
    %v1283 = vxor.u32 %v1282, 2147483648
    %v1284 = vmul.f32 %v1283, 1.442695
    %v1285 = vpow.pop %v1284
    %v1286 = vadd.f32 %v1285, 1.0
    %v1287 = vrcp.pop %v1286
    %v1288 = vmul.f32 1.0, %v1287
    %v1289 = vtanh.pop %v1282
    %v1290 = vmul.f32 %v1288, %v1140
    %1292 = vrot.lane.b32.xlu0 %v1289, 64
    %v1293 = vpop.permute.xlu0 %1292
    %v1295 = vmul.f32 %v1288, %v1293
    %1297 = vrot.lane.b32.xlu0 %v1295, 32
    %v1298 = vpop.permute.xlu0 %1297
    %v1300 = vadd.f32 %v1290, %v1298
    %v1301 = vtanh.pop %v1300
    %1303 = vrot.lane.b32.xlu0 %v1301, 64
    %v1304 = vpop.permute.xlu0 %1303
    %v1306 = vmul.f32 %v1288, %v1304
    %1308 = vrot.lane.b32.xlu0 %v1306, 32
    %v1309 = vpop.permute.xlu0 %1308
    %1311 = vrot.lane.b32.xlu0 %v1222, 64
    %v1312 = vpop.permute.xlu0 %1311
    %v1314 = vsel %vm76, %v1309, %v1312
    %v1315 = vpack.c.bf16 %v1314, %v1314
    %v1317 = vsel %vm189, %v1315, 0
    %1319 = vmatprep.subr.bf16.mxu0 0
    %1320 = vmatpush1.bf16.msra.mxu0 0
    %1321 = vmatprep.subr.bf16.mxu0 0
    %1322 = vmatpush1.bf16.msra.mxu0 0
    %1323 = vmatprep.subr.bf16.mxu0 0
    %1324 = vmatpush1.bf16.msra.mxu0 0
    %1325 = vmatprep.subr.bf16.mxu0 0
    %1326 = vmatpush1.bf16.msra.mxu0 0
    %1327 = vmatprep.subr.bf16.mxu0 0
    %1328 = vmatpush1.bf16.msra.mxu0 %v184
    %1329 = vmatprep.subr.bf16.mxu0 0
    %1330 = vmatpush1.bf16.msra.mxu0 %v183
    %1331 = vmatprep.subr.bf16.mxu0 0
    %1332 = vmatpush1.bf16.msra.mxu0 %v182
    %1333 = vmatprep.subr.bf16.mxu0 0
    %1334 = vmatpush1.bf16.msra.mxu0 %v181
    %1335 = vmatprep.subr.bf16.mxu0 0
    %1336 = vmatpush2.bf16.msra.mxu0 0
    %1337 = vmatprep.subr.bf16.mxu0 0
    %1338 = vmatpush2.bf16.msra.mxu0 0
    %1339 = vmatprep.subr.bf16.mxu0 0
    %1340 = vmatpush2.bf16.msra.mxu0 0
    %1341 = vmatprep.subr.bf16.mxu0 0
    %1342 = vmatpush2.bf16.msra.mxu0 0
    %1343 = vmatprep.subr.bf16.mxu0 0
    %1344 = vmatpush2.bf16.msra.mxu0 0
    %1345 = vmatprep.subr.bf16.mxu0 0
    %1346 = vmatpush2.bf16.msra.mxu0 0
    %1347 = vmatprep.subr.bf16.mxu0 0
    %1348 = vmatpush2.bf16.msra.mxu0 0
    %1349 = vmatprep.subr.bf16.mxu0 0
    %1350 = vmatpush2.bf16.msra.mxu0 0
    %1351 = vmatprep.mubr.bf16.mxu0 0
    %1352 = vmatmul.mubr.bf16.gmra.mxu0 %v1317
    %v1353 = vpop.f32.mrf.mxu0
    %v1354 = vadd.f32 %v163, %v1353
    %v1355 = vpop.f32.mrf.mxu0
    %v1356 = vpop.f32.mrf.mxu0
    %v1357 = vpop.f32.mrf.mxu0
    %1358 = vdwg.mxu0
    %v1359 = vxor.u32 %v1354, 2147483648
    %v1360 = vmul.f32 %v1359, 1.442695
    %v1361 = vpow.pop %v1360
    %v1362 = vadd.f32 %v1361, 1.0
    %v1363 = vrcp.pop %v1362
    %v1364 = vmul.f32 1.0, %v1363
    %v1365 = vtanh.pop %v1354
    %v1366 = vmul.f32 %v1364, %v1216
    %1368 = vrot.lane.b32.xlu0 %v1365, 64
    %v1369 = vpop.permute.xlu0 %1368
    %v1371 = vmul.f32 %v1364, %v1369
    %1373 = vrot.lane.b32.xlu0 %v1371, 32
    %v1374 = vpop.permute.xlu0 %1373
    %v1376 = vadd.f32 %v1366, %v1374
    %v1377 = vtanh.pop %v1376
    %1379 = vrot.lane.b32.xlu0 %v1377, 64
    %v1380 = vpop.permute.xlu0 %1379
    %v1382 = vmul.f32 %v1364, %v1380
    %1384 = vrot.lane.b32.xlu0 %v1382, 32
    %v1385 = vpop.permute.xlu0 %1384
    %s1387 = scalar_lea.vmem %s6, %s1232
    %1388 = vst.msk [vmem:[%s1387] sm:$0x1] %vm266, %v1385
    %s1389 = sadd.s32 %s61, 15
    %s1390 = scalar_lea.vmem %s6, %s1389
    %1391 = vst.msk [vmem:[%s1390 - $0x1] sm:$0x2] %vm270, %v1385
    %vm1392 = vcmask 254976
    %1393 = vst.msk [vmem:[#allocation2] sm:$0x3] %vm1392, %v1309
    %1395 = vrot.lane.b32.xlu0 %v1300, 96
    %v1396 = vpop.permute.xlu0 %1395
    %1398 = vst.msk [vmem:[#allocation4] sm:$0x3] %vm1392, %v1396
    %1399 = vst.msk [vmem:[%s56] sm:$0x3] %vm1392, %v1385
    %1401 = vrot.lane.b32.xlu0 %v1376, 96
    %v1402 = vpop.permute.xlu0 %1401
    %1404 = vst.msk [vmem:[%s59] sm:$0x3] %vm1392, %v1402
    // Predicated region
    $region30: #{text_generator_forward.4} parent=1 // pred_check
      _
    $region31: #{text_generator_forward.4} parent=1 // pred_check_branch
      %1406 = sbr.rel (0) target = $region33
    $region32: #{text_generator_forward.4} parent=1 // pred_region
      _
    $region33: #{text_generator_forward.4} parent=1 // pred_fallthru
      _
    // Predicated region
    $region34: #{text_generator_forward.4} parent=1 // pred_check
      _
    $region35: #{text_generator_forward.4} parent=1 // pred_check_branch
      %1408 = sbr.rel (0) target = $region37
    $region36: #{text_generator_forward.4} parent=1 // pred_region
      %s1410 = ssub.s32 64, 64
      %1411 = vsyncadd [#allocation3], %s1410
      %s1412 = sshll.u32 [#allocation2], 4
      %s1413 = int_to_ptr.vmem [resolvable:$true] %s1412
      %1418 = dma.vmem_to_hbm [thread:$0]  %s1413, 64, %s7, [#allocation3], 32, 32, 2
    $region37: #{text_generator_forward.4} parent=1 // pred_fallthru
      _
    // Predicated region
    $region38: #{text_generator_forward.4} parent=1 // pred_check
      _
    $region39: #{text_generator_forward.4} parent=1 // pred_check_branch
      %1420 = sbr.rel (0) target = $region41
    $region40: #{text_generator_forward.4} parent=1 // pred_region
      %s1422 = ssub.s32 64, 64
      %1423 = vsyncadd [#allocation5], %s1422
      %s1424 = sshll.u32 [#allocation4], 4
      %s1425 = int_to_ptr.vmem [resolvable:$true] %s1424
      %1430 = dma.vmem_to_hbm [thread:$0]  %s1425, 64, %s8, [#allocation5], 32, 32, 2
    $region41: #{text_generator_forward.4} parent=1 // pred_fallthru
      _
    // Predicated region
    $region42: #{text_generator_forward.4} parent=1 // pred_check
      _
    $region43: #{text_generator_forward.4} parent=1 // pred_check_branch
      %1432 = sbr.rel (0) target = $region45
    $region44: #{text_generator_forward.4} parent=1 // pred_region
      _
    $region45: #{text_generator_forward.4} parent=1 // pred_fallthru
      _
    // Predicated region
    $region46: #{text_generator_forward.4} parent=1 // pred_check
      _
    $region47: #{text_generator_forward.4} parent=1 // pred_check_branch
      %1434 = sbr.rel (0) target = $region49
    $region48: #{text_generator_forward.4} parent=1 // pred_region
      %1435 = dma.done [#allocation3], 64
    $region49: #{text_generator_forward.4} parent=1 // pred_fallthru
      _
    // Predicated region
    $region50: #{text_generator_forward.4} parent=1 // pred_check
      _
    $region51: #{text_generator_forward.4} parent=1 // pred_check_branch
      %1437 = sbr.rel (0) target = $region53
    $region52: #{text_generator_forward.4} parent=1 // pred_region
      %1438 = dma.done [#allocation5], 64
    $region53: #{text_generator_forward.4} parent=1 // pred_fallthru
      _
    %1439 = vsyncpa [#allocation3], 1
    %1440 = vsyncpa [#allocation5], 1

</llo_original>
